<compile_context>
chip_gen: v6e
topology: v6e:2x2x1
jax: 0.10.0
libtpu: 0.0.40
codegen_flags: <defaults>
</compile_context>

<pallas_src>
import numpy as np
import jax
import jax.numpy as jnp
from jax import lax
from jax.experimental import pallas as pl
from jax.experimental.pallas import tpu as pltpu

BN_EPS = 1e-5
# MXU operand dtype: bf16 runs the MXU at full rate on all generations; the
# accumulation and all VPU/EUP (BN/activation/pool) math stays f32.
MXU_DTYPE = jnp.bfloat16

# Hyperparameters for the "dynamic" architecture (small, deterministic choice).
HP = {
    "num_layers": 2,
    "units_0": 8,  "kernel_size_0": 3, "activation_0": "relu",
    "pool_size_0": 2, "dropout_0": 0.1, "dilation_0": 1,
    "units_1": 16, "kernel_size_1": 3, "activation_1": "tanh",
    "pool_size_1": 2, "dropout_1": 0.2, "dilation_1": 2,
}
INPUT_LEN = 16     # small stand-in for 101
BATCH = 16
BATCH_TILE = 8     # batches per grid step; multiple of 8 so the (TB, 1) output
                   # block satisfies the sublane-divisibility constraint
IN_CHANNELS = 4    # one-hot DNA channels, as in the original module


def _activate(y, act):
    if act == "relu":
        return jnp.maximum(y, 0.0)
    if act == "tanh":
        return jnp.tanh(y)
    if act == "gelu":
        # TODO(synk): exact-erf GELU (PyTorch default) may not lower in Mosaic;
        # tanh-approx GELU substituted (unexercised by the HP above).
        return jax.nn.gelu(y, approximate=True)
    return y


# ----------------------------------------------------------------------------
# Fused Pallas kernel (whole forward pass for one TB-batch tile)
# ----------------------------------------------------------------------------
def _make_fused_kernel(meta, tb):
    """meta: per-layer static dicts (L, C_in, C_out, K, dil, pool, act, left, l_out)."""
    n_layers = len(meta)

    def _pool_read(buf_ref, L, l_out, pool, c_out):
        # MaxPool1d: `pool` strided sublane reads of the staged rows, maxed
        # in-register.  O(rows*C) loads; no selection matmul.
        if L % pool == 0:
            rows_out = tb * l_out
            mx = buf_ref[pl.ds(0, rows_out, stride=pool), 0:c_out]
            for p in range(1, pool):
                mx = jnp.maximum(mx, buf_ref[pl.ds(p, rows_out, stride=pool), 0:c_out])
            return mx
        # L % pool != 0: the dropped tail breaks batch alignment -> per-sequence reads.
        parts = []
        for b in range(tb):
            mx = buf_ref[pl.ds(b * L, l_out, stride=pool), 0:c_out]
            for p in range(1, pool):
                mx = jnp.maximum(mx, buf_ref[pl.ds(b * L + p, l_out, stride=pool), 0:c_out])
            parts.append(mx)
        return jnp.concatenate(parts, axis=0)

    def kernel(*refs):
        # refs = [x, (w_stk, shift) * n_layers, w_lin_tiled, b_lin, out, staging]
        x_ref = refs[0]
        lrefs = [refs[1 + 2 * i: 3 + 2 * i] for i in range(n_layers)]
        wlin_ref = refs[1 + 2 * n_layers]
        blin_ref = refs[2 + 2 * n_layers]
        out_ref = refs[3 + 2 * n_layers]
        buf_ref = refs[4 + 2 * n_layers]

        # Activations carried as a folded (TB*L, C) value (NLC, batch in rows).
        a = x_ref[...].astype(jnp.float32)

        for m, (w_ref, sh_ref) in zip(meta, lrefs):
            L, c_out = m["L"], m["C_out"]
            rows = tb * L
            # within-sequence position of every folded row (computed in-kernel)
            pos = lax.broadcasted_iota(jnp.int32, (rows, 1), 0) % L

            # ---- in-register dense im2col: K rolled/masked taps, width K*C_in ----
            taps = []
            for t in range(m["K"]):
                s = t * m["dil"] - m["left"]           # tap offset ('same' padding)
                if s == 0:
                    taps.append(a)
                    continue
                # roll pulls neighbor rows; mask kills padding / cross-batch rows
                src = pltpu.roll(a, shift=(-s) % rows, axis=0)
                mask = (pos < L - s) if s > 0 else (pos >= -s)
                taps.append(jnp.where(mask, src, 0.0))
            col = jnp.concatenate(taps, axis=1)        # (rows, K*C_in)

            # ---- Conv1d (+BN scale folded into weight) as ONE bf16 MXU matmul ----
            y = jnp.dot(col.astype(w_ref.dtype), w_ref[...],
                        preferred_element_type=jnp.float32)
            y = _activate(y + sh_ref[...], m["act"])   # (1,C) shift broadcasts

            # ---- MaxPool1d: stage once, strided reads + max ----------------------
            buf_ref[0:rows, 0:c_out] = y
            a = _pool_read(buf_ref, L, m["l_out"], m["pool"], c_out)
            # Dropout: identity at inference time.

        # ---- Flatten (NLC order; linear weight pre-permuted+tiled) + Linear + Sigmoid
        l_last, c_last = meta[-1]["l_out"], meta[-1]["C_out"]
        rows = tb * l_last
        prod = a * wlin_ref[...]                       # (TB*l_last, c_last)
        buf_ref[0:rows, 0:c_last] = prod
        acc = jnp.zeros((tb, c_last), jnp.float32)
        for j in range(l_last):                        # per-batch segment sum
            acc = acc + buf_ref[pl.ds(j, tb, stride=l_last), 0:c_last]
        logits = jnp.sum(acc, axis=1, keepdims=True) + blin_ref[...]
        out_ref[...] = jax.nn.sigmoid(logits).astype(out_ref.dtype)

    return kernel


# ----------------------------------------------------------------------------
# Wrapper: parameter folding + single pallas_call with a parallel batch grid
# ----------------------------------------------------------------------------
def _prepare_inputs(cfgs, layer_params, lin_params, tb, input_len):
    meta, args = [], []
    L = input_len
    for cfg, p in zip(cfgs, layer_params):
        k, dil, pool = cfg["k"], cfg["dil"], cfg["pool"]
        c_in, c_out = cfg["in_ch"], cfg["out_ch"]
        total = dil * (k - 1)                  # torch padding='same', stride 1
        left = total // 2
        l_out = L // pool

        # fold conv bias + BatchNorm (eval): scale goes INTO the weight,
        # shift stays as a tiny per-channel epilogue add.
        s = p["gamma"] / jnp.sqrt(p["var"] + BN_EPS)
        w = p["w"] * s[:, None, None]                                  # (C_out,C_in,K)
        w_stk = jnp.concatenate([jnp.transpose(w[:, :, t]) for t in range(k)],
                                axis=0).astype(MXU_DTYPE)              # (K*C_in,C_out)
        shift = ((p["b"] - p["mean"]) * s + p["beta"]).reshape(1, c_out)

        args += [w_stk, shift]
        meta.append(dict(L=L, C_in=c_in, C_out=c_out, K=k, dil=dil, pool=pool,
                         act=cfg["act"], left=left, l_out=l_out))
        L = l_out

    # classifier: permute (and tile over the batch tile) the (1, F) weight from
    # torch's NCL flatten order (c*l_last + pos) to the kernel's NLC row layout.
    c_last, l_last = cfgs[-1]["out_ch"], L
    w_lin, b_lin = lin_params
    w2d = jnp.transpose(w_lin.reshape(c_last, l_last))                 # (l_last,c_last)
    w_tiled = jnp.tile(w2d, (tb, 1))                                   # (TB*l_last,c_last)
    args += [w_tiled, b_lin.reshape(1, 1)]
    return meta, args


def dynamic_cnn_forward(x_ncl, cfgs, layer_params, lin_params, batch_tile=None):
    """x_ncl: (B, 4, L) like the PyTorch module; returns (B, 1) probabilities."""
    B, c0, L0 = x_ncl.shape
    tb = B if batch_tile is None else batch_tile
    assert B % tb == 0, (B, tb)
    meta, args = _prepare_inputs(cfgs, layer_params, lin_params, tb, L0)
    # input glue only: PyTorch NCL -> folded NLC rows (B*L, C)
    x_folded = jnp.transpose(x_ncl, (0, 2, 1)).reshape(B * L0, c0)

    in_specs = [pl.BlockSpec((tb * L0, c0), lambda b: (b, 0))]
    in_specs += [pl.BlockSpec(a.shape, lambda b: (0, 0)) for a in args]
    out_spec = pl.BlockSpec((tb, 1), lambda b: (b, 0))
    c_max = max(m["C_out"] for m in meta)
    scratch = [pltpu.VMEM((tb * L0, c_max), jnp.float32)]   # pool/flatten staging

    # advisory cost estimate for XLA's scheduler
    flops, transc = 0, 0
    for m in meta:
        rows = B * m["L"]
        flops += 2 * rows * (m["K"] * m["C_in"]) * m["C_out"]      # conv matmul
        flops += (2 + m["pool"]) * rows * m["C_out"]               # shift+act+pool
        if m["act"] in ("tanh", "gelu"):
            transc += rows * m["C_out"]
    rows_last, c_last = B * meta[-1]["l_out"], meta[-1]["C_out"]
    flops += 3 * rows_last * c_last + 2 * B                        # flatten+linear
    transc += B                                                    # sigmoid
    nbytes = lambda a: int(np.prod(a.shape)) * a.dtype.itemsize
    bytes_accessed = nbytes(x_folded) + sum(nbytes(a) for a in args) + B * 4

    kern = _make_fused_kernel(meta, tb)
    return pl.pallas_call(
        kern,
        out_shape=jax.ShapeDtypeStruct((B, 1), x_ncl.dtype),
        grid_spec=pltpu.PrefetchScalarGridSpec(
            num_scalar_prefetch=0,
            grid=(B // tb,),
            in_specs=in_specs,
            out_specs=out_spec,
            scratch_shapes=scratch),
        compiler_params=pltpu.CompilerParams(
            dimension_semantics=("parallel",)),
        cost_estimate=pl.CostEstimate(flops=int(flops), transcendentals=int(transc),
                                      bytes_accessed=int(bytes_accessed)),
    )(x_folded, *args)


# ----------------------------------------------------------------------------
# Architecture construction + deterministic parameter init
# ----------------------------------------------------------------------------
def build_layer_cfgs(hp, input_len):
    cfgs = []
    in_ch = IN_CHANNELS
    seq_len = input_len
    for i in range(hp["num_layers"]):
        cfg = dict(in_ch=in_ch, out_ch=hp[f"units_{i}"], k=hp[f"kernel_size_{i}"],
                   act=hp[f"activation_{i}"], pool=hp[f"pool_size_{i}"],
                   dil=hp.get(f"dilation_{i}", 1))
        cfgs.append(cfg)
        in_ch = cfg["out_ch"]
        # NOTE: this layer-break heuristic intentionally mirrors the PyTorch
        # module's (L - k + 1)//pool rule, even though the 'same' conv actually
        # preserves length (actual lengths are tracked as L//pool elsewhere).
        seq_len = (seq_len - cfg["k"] + 1) // cfg["pool"]
        if seq_len <= 1:
            break
    return cfgs


def init_params(key, cfgs, input_len):
    params = []
    L = input_len
    for cfg in cfgs:
        key, k1, k2, k3, k4, k5, k6 = jax.random.split(key, 7)
        fan_in = cfg["in_ch"] * cfg["k"]
        params.append(dict(
            w=jax.random.normal(k1, (cfg["out_ch"], cfg["in_ch"], cfg["k"]),
                                jnp.float32) / jnp.sqrt(fan_in),
            b=0.1 * jax.random.normal(k2, (cfg["out_ch"],), jnp.float32),
            gamma=1.0 + 0.1 * jax.random.normal(k3, (cfg["out_ch"],), jnp.float32),
            beta=0.1 * jax.random.normal(k4, (cfg["out_ch"],), jnp.float32),
            mean=0.1 * jax.random.normal(k5, (cfg["out_ch"],), jnp.float32),
            var=jax.random.uniform(k6, (cfg["out_ch"],), jnp.float32, 0.5, 1.5),
        ))
        L = L // cfg["pool"]                    # 'same' conv preserves length
    flat = cfgs[-1]["out_ch"] * L
    key, k7, k8 = jax.random.split(key, 3)
    w_lin = jax.random.normal(k7, (1, flat), jnp.float32) / jnp.sqrt(flat)
    b_lin = 0.1 * jax.random.normal(k8, (1,), jnp.float32)
    return params, (w_lin, b_lin)


# ----------------------------------------------------------------------------
# Pure-JAX reference (PyTorch semantics, NCL layout, full f32)
# ----------------------------------------------------------------------------
def reference_forward(x, cfgs, layer_params, lin_params):
    for cfg, p in zip(cfgs, layer_params):
        total = cfg["dil"] * (cfg["k"] - 1)
        left = total // 2
        x_pad = jnp.pad(x, ((0, 0), (0, 0), (left, total - left)))
        y = lax.conv_general_dilated(
            x_pad, p["w"], window_strides=(1,), padding=[(0, 0)],
            rhs_dilation=(cfg["dil"],), dimension_numbers=("NCH", "OIH", "NCH"))
        y = y + p["b"][None, :, None]
        s = p["gamma"] / jnp.sqrt(p["var"] + BN_EPS)
        y = (y - p["mean"][None, :, None]) * s[None, :, None] + p["beta"][None, :, None]
        y = _activate(y, cfg["act"])
        l_out = y.shape[-1] // cfg["pool"]
        y = y[:, :, :l_out * cfg["pool"]].reshape(
            y.shape[0], y.shape[1], l_out, cfg["pool"]).max(-1)
        x = y
    flat = x.reshape(x.shape[0], -1)
    w_lin, b_lin = lin_params
    return jax.nn.sigmoid(flat @ w_lin.T + b_lin)


if __name__ == "__main__":
    key = jax.random.PRNGKey(0)
    key, kp, kx = jax.random.split(key, 3)

    cfgs = build_layer_cfgs(HP, INPUT_LEN)
    layer_params, lin_params = init_params(kp, cfgs, INPUT_LEN)

    # Input in PyTorch Conv1d layout: (batch, channels, length)
    x = jax.random.normal(kx, (BATCH, IN_CHANNELS, INPUT_LEN), jnp.float32)

    fwd = jax.jit(lambda xx: dynamic_cnn_forward(xx, cfgs, layer_params, lin_params,
                                                 batch_tile=BATCH_TILE))
    out = jax.block_until_ready(fwd(x))

    ref = reference_forward(x, cfgs, layer_params, lin_params)
    assert out.shape == (BATCH, 1), out.shape
    # bf16 MXU operands (f32 accumulation) vs the full-f32 reference -> loosened check.
    assert jnp.allclose(out, ref, atol=2e-2, rtol=2e-2), (out, ref)
    print("KERNEL_OK")
</pallas_src>

<mosaic_0001>
module attributes {stable_mosaic.version = 11 : i64} {
  func.func @kernel(%arg0: i32, %arg1: memref<128x4xf32, #tpu.memory_space<vmem>>, %arg2: memref<12x8xbf16, #tpu.memory_space<vmem>>, %arg3: memref<1x8xf32, #tpu.memory_space<vmem>>, %arg4: memref<24x16xbf16, #tpu.memory_space<vmem>>, %arg5: memref<1x16xf32, #tpu.memory_space<vmem>>, %arg6: memref<32x16xf32, #tpu.memory_space<vmem>>, %arg7: memref<1x1xf32, #tpu.memory_space<vmem>>, %arg8: memref<8x1xf32, #tpu.memory_space<vmem>>, %arg9: memref<128x16xf32, #tpu.memory_space<vmem>>) attributes {dimension_semantics = [#tpu.dimension_semantics<parallel>], iteration_bounds = array<i64: 2>, scalar_prefetch = 0 : i64, scratch_operands = 1 : i64, tpu.core_type = #tpu.core_type<tc>, window_params = [{transform_indices = @transform_0, window_bounds = array<i64: 128, 4>}, {pipeline_mode = #tpu.pipeline_mode<synchronous>, transform_indices = @transform_1, window_bounds = array<i64: 12, 8>}, {pipeline_mode = #tpu.pipeline_mode<synchronous>, transform_indices = @transform_2, window_bounds = array<i64: 1, 8>}, {pipeline_mode = #tpu.pipeline_mode<synchronous>, transform_indices = @transform_3, window_bounds = array<i64: 24, 16>}, {pipeline_mode = #tpu.pipeline_mode<synchronous>, transform_indices = @transform_4, window_bounds = array<i64: 1, 16>}, {pipeline_mode = #tpu.pipeline_mode<synchronous>, transform_indices = @transform_5, window_bounds = array<i64: 32, 16>}, {pipeline_mode = #tpu.pipeline_mode<synchronous>, transform_indices = @transform_6, window_bounds = array<i64: 1, 1>}, {transform_indices = @transform_7, window_bounds = array<i64: 8, 1>}]} {
    %c0 = arith.constant 0 : index
    %c0_0 = arith.constant 0 : index
    %0 = vector.load %arg1[%c0, %c0_0] : memref<128x4xf32, #tpu.memory_space<vmem>>, vector<128x4xf32>
    %1 = tpu.iota {dimensions = array<i32: 0>} : vector<128x1xi32>
    %c16_i32 = arith.constant 16 : i32
    %c0_i32 = arith.constant 0 : i32
    %2 = arith.cmpi eq, %c16_i32, %c0_i32 : i32
    %c1_i32 = arith.constant 1 : i32
    %3 = arith.select %2, %c1_i32, %c16_i32 : i32
    %4 = vector.broadcast %3 : i32 to vector<128x1xi32>
    %5 = arith.remsi %1, %4 : vector<128x1xi32>
    %c0_i32_1 = arith.constant 0 : i32
    %6 = vector.broadcast %c0_i32_1 : i32 to vector<128x1xi32>
    %7 = arith.cmpi ne, %5, %6 : vector<128x1xi32>
    %c0_i32_2 = arith.constant 0 : i32
    %8 = vector.broadcast %c0_i32_2 : i32 to vector<128x1xi32>
    %9 = arith.cmpi slt, %5, %8 : vector<128x1xi32>
    %c0_i32_3 = arith.constant 0 : i32
    %10 = arith.cmpi slt, %3, %c0_i32_3 : i32
    %11 = vector.broadcast %10 : i1 to vector<128x1xi1>
    %12 = vector.broadcast %11 : vector<128x1xi1> to vector<128x1xi1>
    %13 = arith.xori %9, %12 : vector<128x1xi1>
    %14 = arith.andi %13, %7 : vector<128x1xi1>
    %15 = vector.broadcast %3 : i32 to vector<128x1xi32>
    %16 = arith.addi %5, %15 : vector<128x1xi32>
    %17 = arith.select %14, %16, %5 : vector<128x1xi1>, vector<128x1xi32>
    %c1_i32_4 = arith.constant 1 : i32
    %18 = tpu.dynamic_rotate %0 by %c1_i32_4 dim 0 : vector<128x4xf32>, i32 -> vector<128x4xf32>
    %c1_i32_5 = arith.constant 1 : i32
    %19 = vector.broadcast %c1_i32_5 : i32 to vector<128x1xi32>
    %20 = arith.cmpi sge, %17, %19 : vector<128x1xi32>
    %cst = arith.constant 0.000000e+00 : f32
    %21 = vector.shape_cast %20 : vector<128x1xi1> to vector<128x1xi1>
    %22 = vector.broadcast %21 : vector<128x1xi1> to vector<128x4xi1>
    %23 = vector.broadcast %cst : f32 to vector<128x4xf32>
    %24 = arith.select %22, %18, %23 : vector<128x4xi1>, vector<128x4xf32>
    %c127_i32 = arith.constant 127 : i32
    %25 = tpu.dynamic_rotate %0 by %c127_i32 dim 0 : vector<128x4xf32>, i32 -> vector<128x4xf32>
    %c15_i32 = arith.constant 15 : i32
    %26 = vector.broadcast %c15_i32 : i32 to vector<128x1xi32>
    %27 = arith.cmpi slt, %17, %26 : vector<128x1xi32>
    %cst_6 = arith.constant 0.000000e+00 : f32
    %28 = vector.shape_cast %27 : vector<128x1xi1> to vector<128x1xi1>
    %29 = vector.broadcast %28 : vector<128x1xi1> to vector<128x4xi1>
    %30 = vector.broadcast %cst_6 : f32 to vector<128x4xf32>
    %31 = arith.select %29, %25, %30 : vector<128x4xi1>, vector<128x4xf32>
    %32 = tpu.concatenate %24, %0, %31 in 1 : vector<128x4xf32>, vector<128x4xf32>, vector<128x4xf32> -> vector<128x12xf32>
    %33 = arith.truncf %32 : vector<128x12xf32> to vector<128x12xbf16>
    %c0_7 = arith.constant 0 : index
    %c0_8 = arith.constant 0 : index
    %34 = vector.load %arg2[%c0_7, %c0_8] : memref<12x8xbf16, #tpu.memory_space<vmem>>, vector<12x8xbf16>
    %cst_9 = arith.constant dense<0.000000e+00> : vector<128x8xf32>
    %35 = tpu.matmul %33, %34, %cst_9 {dimension_numbers = #tpu.dot_dimension_numbers<[1], [0], [0], [1], [0, 0, 1, 1], [], []>} : vector<128x12xbf16>, vector<12x8xbf16>, vector<128x8xf32> -> vector<128x8xf32>
    %c0_10 = arith.constant 0 : index
    %c0_11 = arith.constant 0 : index
    %36 = vector.load %arg3[%c0_10, %c0_11] : memref<1x8xf32, #tpu.memory_space<vmem>>, vector<1x8xf32>
    %37 = vector.broadcast %36 : vector<1x8xf32> to vector<128x8xf32>
    %38 = arith.addf %35, %37 : vector<128x8xf32>
    %cst_12 = arith.constant 0.000000e+00 : f32
    %39 = vector.broadcast %cst_12 : f32 to vector<128x8xf32>
    %40 = arith.maximumf %38, %39 : vector<128x8xf32>
    %c0_13 = arith.constant 0 : index
    %c0_14 = arith.constant 0 : index
    %41 = vector.load %arg9[%c0_13, %c0_14] : memref<128x16xf32, #tpu.memory_space<vmem>>, vector<128x8xf32>
    tpu.vector_store %arg9[%c0_13, %c0_14], %40 {strides = array<i32>} : memref<128x16xf32, #tpu.memory_space<vmem>>, vector<128x8xf32>,
    %c0_15 = arith.constant 0 : index
    %c0_16 = arith.constant 0 : index
    %42 = tpu.strided_load %arg9[%c0_15, %c0_16] {strides = array<i32: 2, 1>} : memref<128x16xf32, #tpu.memory_space<vmem>>, vector<64x8xf32>
    %c1 = arith.constant 1 : index
    %c0_17 = arith.constant 0 : index
    %43 = tpu.strided_load %arg9[%c1, %c0_17] {strides = array<i32: 2, 1>} : memref<128x16xf32, #tpu.memory_space<vmem>>, vector<64x8xf32>
    %44 = arith.maximumf %42, %43 : vector<64x8xf32>
    %45 = tpu.iota {dimensions = array<i32: 0>} : vector<64x1xi32>
    %c8_i32 = arith.constant 8 : i32
    %c0_i32_18 = arith.constant 0 : i32
    %46 = arith.cmpi eq, %c8_i32, %c0_i32_18 : i32
    %c1_i32_19 = arith.constant 1 : i32
    %47 = arith.select %46, %c1_i32_19, %c8_i32 : i32
    %48 = vector.broadcast %47 : i32 to vector<64x1xi32>
    %49 = arith.remsi %45, %48 : vector<64x1xi32>
    %c0_i32_20 = arith.constant 0 : i32
    %50 = vector.broadcast %c0_i32_20 : i32 to vector<64x1xi32>
    %51 = arith.cmpi ne, %49, %50 : vector<64x1xi32>
    %c0_i32_21 = arith.constant 0 : i32
    %52 = vector.broadcast %c0_i32_21 : i32 to vector<64x1xi32>
    %53 = arith.cmpi slt, %49, %52 : vector<64x1xi32>
    %c0_i32_22 = arith.constant 0 : i32
    %54 = arith.cmpi slt, %47, %c0_i32_22 : i32
    %55 = vector.broadcast %54 : i1 to vector<64x1xi1>
    %56 = vector.broadcast %55 : vector<64x1xi1> to vector<64x1xi1>
    %57 = arith.xori %53, %56 : vector<64x1xi1>
    %58 = arith.andi %57, %51 : vector<64x1xi1>
    %59 = vector.broadcast %47 : i32 to vector<64x1xi32>
    %60 = arith.addi %49, %59 : vector<64x1xi32>
    %61 = arith.select %58, %60, %49 : vector<64x1xi1>, vector<64x1xi32>
    %c2_i32 = arith.constant 2 : i32
    %62 = tpu.dynamic_rotate %44 by %c2_i32 dim 0 : vector<64x8xf32>, i32 -> vector<64x8xf32>
    %c2_i32_23 = arith.constant 2 : i32
    %63 = vector.broadcast %c2_i32_23 : i32 to vector<64x1xi32>
    %64 = arith.cmpi sge, %61, %63 : vector<64x1xi32>
    %cst_24 = arith.constant 0.000000e+00 : f32
    %65 = vector.shape_cast %64 : vector<64x1xi1> to vector<64x1xi1>
    %66 = vector.broadcast %65 : vector<64x1xi1> to vector<64x8xi1>
    %67 = vector.broadcast %cst_24 : f32 to vector<64x8xf32>
    %68 = arith.select %66, %62, %67 : vector<64x8xi1>, vector<64x8xf32>
    %c62_i32 = arith.constant 62 : i32
    %69 = tpu.dynamic_rotate %44 by %c62_i32 dim 0 : vector<64x8xf32>, i32 -> vector<64x8xf32>
    %c6_i32 = arith.constant 6 : i32
    %70 = vector.broadcast %c6_i32 : i32 to vector<64x1xi32>
    %71 = arith.cmpi slt, %61, %70 : vector<64x1xi32>
    %cst_25 = arith.constant 0.000000e+00 : f32
    %72 = vector.shape_cast %71 : vector<64x1xi1> to vector<64x1xi1>
    %73 = vector.broadcast %72 : vector<64x1xi1> to vector<64x8xi1>
    %74 = vector.broadcast %cst_25 : f32 to vector<64x8xf32>
    %75 = arith.select %73, %69, %74 : vector<64x8xi1>, vector<64x8xf32>
    %76 = tpu.concatenate %68, %44, %75 in 1 : vector<64x8xf32>, vector<64x8xf32>, vector<64x8xf32> -> vector<64x24xf32>
    %77 = arith.truncf %76 : vector<64x24xf32> to vector<64x24xbf16>
    %c0_26 = arith.constant 0 : index
    %c0_27 = arith.constant 0 : index
    %78 = vector.load %arg4[%c0_26, %c0_27] : memref<24x16xbf16, #tpu.memory_space<vmem>>, vector<24x16xbf16>
    %cst_28 = arith.constant dense<0.000000e+00> : vector<64x16xf32>
    %79 = tpu.matmul %77, %78, %cst_28 {dimension_numbers = #tpu.dot_dimension_numbers<[1], [0], [0], [1], [0, 0, 1, 1], [], []>} : vector<64x24xbf16>, vector<24x16xbf16>, vector<64x16xf32> -> vector<64x16xf32>
    %c0_29 = arith.constant 0 : index
    %c0_30 = arith.constant 0 : index
    %80 = vector.load %arg5[%c0_29, %c0_30] : memref<1x16xf32, #tpu.memory_space<vmem>>, vector<1x16xf32>
    %81 = vector.broadcast %80 : vector<1x16xf32> to vector<64x16xf32>
    %82 = arith.addf %79, %81 : vector<64x16xf32>
    %83 = math.tanh %82 : vector<64x16xf32>
    %c0_31 = arith.constant 0 : index
    %c0_32 = arith.constant 0 : index
    %84 = vector.load %arg9[%c0_31, %c0_32] : memref<128x16xf32, #tpu.memory_space<vmem>>, vector<64x16xf32>
    tpu.vector_store %arg9[%c0_31, %c0_32], %83 {strides = array<i32>} : memref<128x16xf32, #tpu.memory_space<vmem>>, vector<64x16xf32>,
    %c0_33 = arith.constant 0 : index
    %c0_34 = arith.constant 0 : index
    %85 = tpu.strided_load %arg9[%c0_33, %c0_34] {strides = array<i32: 2, 1>} : memref<128x16xf32, #tpu.memory_space<vmem>>, vector<32x16xf32>
    %c1_35 = arith.constant 1 : index
    %c0_36 = arith.constant 0 : index
    %86 = tpu.strided_load %arg9[%c1_35, %c0_36] {strides = array<i32: 2, 1>} : memref<128x16xf32, #tpu.memory_space<vmem>>, vector<32x16xf32>
    %87 = arith.maximumf %85, %86 : vector<32x16xf32>
    %c0_37 = arith.constant 0 : index
    %c0_38 = arith.constant 0 : index
    %88 = vector.load %arg6[%c0_37, %c0_38] : memref<32x16xf32, #tpu.memory_space<vmem>>, vector<32x16xf32>
    %89 = arith.mulf %87, %88 : vector<32x16xf32>
    %c0_39 = arith.constant 0 : index
    %c0_40 = arith.constant 0 : index
    %90 = vector.load %arg9[%c0_39, %c0_40] : memref<128x16xf32, #tpu.memory_space<vmem>>, vector<32x16xf32>
    tpu.vector_store %arg9[%c0_39, %c0_40], %89 {strides = array<i32>} : memref<128x16xf32, #tpu.memory_space<vmem>>, vector<32x16xf32>,
    %cst_41 = arith.constant 0.000000e+00 : f32
    %91 = vector.broadcast %cst_41 : f32 to vector<8x16xf32>
    %c0_42 = arith.constant 0 : index
    %c0_43 = arith.constant 0 : index
    %92 = tpu.strided_load %arg9[%c0_42, %c0_43] {strides = array<i32: 4, 1>} : memref<128x16xf32, #tpu.memory_space<vmem>>, vector<8x16xf32>
    %93 = arith.addf %91, %92 : vector<8x16xf32>
    %c1_44 = arith.constant 1 : index
    %c0_45 = arith.constant 0 : index
    %94 = tpu.strided_load %arg9[%c1_44, %c0_45] {strides = array<i32: 4, 1>} : memref<128x16xf32, #tpu.memory_space<vmem>>, vector<8x16xf32>
    %95 = arith.addf %93, %94 : vector<8x16xf32>
    %c2 = arith.constant 2 : index
    %c0_46 = arith.constant 0 : index
    %96 = tpu.strided_load %arg9[%c2, %c0_46] {strides = array<i32: 4, 1>} : memref<128x16xf32, #tpu.memory_space<vmem>>, vector<8x16xf32>
    %97 = arith.addf %95, %96 : vector<8x16xf32>
    %c3 = arith.constant 3 : index
    %c0_47 = arith.constant 0 : index
    %98 = tpu.strided_load %arg9[%c3, %c0_47] {strides = array<i32: 4, 1>} : memref<128x16xf32, #tpu.memory_space<vmem>>, vector<8x16xf32>
    %99 = arith.addf %97, %98 : vector<8x16xf32>
    %cst_48 = arith.constant dense<0.000000e+00> : vector<8xf32>
    %100 = vector.multi_reduction <add>, %99, %cst_48 [1] : vector<8x16xf32> to vector<8xf32>
    %101 = vector.shape_cast %100 : vector<8xf32> to vector<8x1xf32>
    %c0_49 = arith.constant 0 : index
    %c0_50 = arith.constant 0 : index
    %102 = vector.load %arg7[%c0_49, %c0_50] : memref<1x1xf32, #tpu.memory_space<vmem>>, vector<1x1xf32>
    %103 = vector.broadcast %102 : vector<1x1xf32> to vector<8x1xf32>
    %104 = arith.addf %101, %103 : vector<8x1xf32>
    %105 = arith.negf %104 : vector<8x1xf32>
    %106 = math.exp %105 : vector<8x1xf32>
    %cst_51 = arith.constant 1.000000e+00 : f32
    %107 = vector.broadcast %cst_51 : f32 to vector<8x1xf32>
    %108 = arith.addf %107, %106 : vector<8x1xf32>
    %109 = arith.divf %107, %108 : vector<8x1xf32>
    %c0_52 = arith.constant 0 : index
    %c0_53 = arith.constant 0 : index
    %110 = vector.load %arg8[%c0_52, %c0_53] : memref<8x1xf32, #tpu.memory_space<vmem>>, vector<8x1xf32>
    tpu.vector_store %arg8[%c0_52, %c0_53], %109 {strides = array<i32>} : memref<8x1xf32, #tpu.memory_space<vmem>>, vector<8x1xf32>,
    return
  }
  func.func @transform_0(%arg0: i32) -> (i32, i32) {
    %c0_i32 = arith.constant 0 : i32
    %c0_i32_0 = arith.constant 0 : i32
    return %arg0, %c0_i32 : i32, i32
  }
  func.func @transform_1(%arg0: i32) -> (i32, i32) {
    %c0_i32 = arith.constant 0 : i32
    %c0_i32_0 = arith.constant 0 : i32
    %c0_i32_1 = arith.constant 0 : i32
    return %c0_i32, %c0_i32_0 : i32, i32
  }
  func.func @transform_2(%arg0: i32) -> (i32, i32) {
    %c0_i32 = arith.constant 0 : i32
    %c0_i32_0 = arith.constant 0 : i32
    %c0_i32_1 = arith.constant 0 : i32
    return %c0_i32, %c0_i32_0 : i32, i32
  }
  func.func @transform_3(%arg0: i32) -> (i32, i32) {
    %c0_i32 = arith.constant 0 : i32
    %c0_i32_0 = arith.constant 0 : i32
    %c0_i32_1 = arith.constant 0 : i32
    return %c0_i32, %c0_i32_0 : i32, i32
  }
  func.func @transform_4(%arg0: i32) -> (i32, i32) {
    %c0_i32 = arith.constant 0 : i32
    %c0_i32_0 = arith.constant 0 : i32
    %c0_i32_1 = arith.constant 0 : i32
    return %c0_i32, %c0_i32_0 : i32, i32
  }
  func.func @transform_5(%arg0: i32) -> (i32, i32) {
    %c0_i32 = arith.constant 0 : i32
    %c0_i32_0 = arith.constant 0 : i32
    %c0_i32_1 = arith.constant 0 : i32
    return %c0_i32, %c0_i32_0 : i32, i32
  }
  func.func @transform_6(%arg0: i32) -> (i32, i32) {
    %c0_i32 = arith.constant 0 : i32
    %c0_i32_0 = arith.constant 0 : i32
    %c0_i32_1 = arith.constant 0 : i32
    return %c0_i32, %c0_i32_0 : i32, i32
  }
  func.func @transform_7(%arg0: i32) -> (i32, i32) {
    %c0_i32 = arith.constant 0 : i32
    %c0_i32_0 = arith.constant 0 : i32
    return %arg0, %c0_i32 : i32, i32
  }
}

</mosaic_0001>

<llo_original>
// kernel: _lambda_.1
$region0: #{_lambda_.1}
  #allocation0 [shape = 'u32[]', space=smem, size = 0x4, offset = 0x4, fixed_abs, tag = 'smem constant byte address 0x4 - core index']
  #allocation1 [shape = 'u32[144,128]{1,0:T(1,128)}', space=vmem, size = 0x12000, scoped, tag = 'internal scratch']
  #allocation2 [shape = 'f32[128,16]{1,0:T(8,128)}', space=vmem, size = 0x10000, scoped, tag = 'scratch operand']
  #allocation3 [shape = 'f32[1,1]{1,0:T(1,128)S(1)}', space=vmem, size = 0x200, scoped, tag = 'scoped memory for _lambda_.1']
  %s0 = inlined_call_operand.vmem [shape: f32[256,4], index: 0, kind: input, shape index: {}]
  %s1 = inlined_call_operand.vmem [shape: bf16[12,8], index: 1, kind: input, shape index: {}]
  %s2 = inlined_call_operand.vmem [shape: f32[1,8], index: 2, kind: input, shape index: {}]
  %s3 = inlined_call_operand.vmem [shape: bf16[24,16], index: 3, kind: input, shape index: {}]
  %s4 = inlined_call_operand.vmem [shape: f32[1,16], index: 4, kind: input, shape index: {}]
  %s5 = inlined_call_operand.vmem [shape: f32[32,16], index: 5, kind: input, shape index: {}]
  %s6 = inlined_call_operand.<no memory space> [shape: f32[1,1], index: 6, kind: input, shape index: {}]
  %s7 = inlined_call_operand.vmem [shape: f32[16,1], index: 7, kind: output, shape index: {}]
  %s8 = sld [smem:[#allocation0]]
  $region61: #{_lambda_.1} parent=0
    _
  %s10 = ssub.s32 1, %s8
  %s11 = scalar_select 0, %s10, %s8
  %v12 = vstv %s6
  %13 = vst [vmem:[#allocation3] sm:$0x1] %v12
  loop: start=0, step=1, limit=4
  $region2: #{_lambda_.1} parent=0 // loop_pre_header
    _
  $region3: #{_lambda_.1} parent=0 // loop_header
    %s15 = sphi 0, %s19
    %p16 = scmp.ge.s32.totalorder %s15, 4
    %s25 = sphi 0, %s27
    %s28 = sphi 0, %s25
    %s29 = sphi 0, %s28
    %s45 = sphi 0, %s29
    %s49 = sphi 0, %s49
    %s51 = sphi 0, %s49
    %s52 = sphi 0, %s51
    %s66 = sphi 0, %s52
    %s70 = sphi 0, %s70
    %s72 = sphi 0, %s70
    %s73 = sphi 0, %s72
    %s87 = sphi 0, %s73
    %s91 = sphi 0, %s91
    %s93 = sphi 0, %s91
    %s94 = sphi 0, %s93
    %s108 = sphi 0, %s94
    %s112 = sphi 0, %s112
    %s114 = sphi 0, %s112
    %s115 = sphi 0, %s114
    %s129 = sphi 0, %s115
    %s133 = sphi 0, %s133
    %s135 = sphi 0, %s133
    %s136 = sphi 0, %s135
    %s150 = sphi 0, %s136
    %s154 = sphi 0, %s154
    %s156 = sphi 0, %s154
    %s157 = sphi 0, %s156
    %s171 = sphi 0, %s157
    %s177 = sphi 0, %s179
    %s180 = sphi 0, %s177
    %s181 = sphi 0, %s180
    %s197 = sphi 0, %s181
  $region4: #{_lambda_.1} parent=0 // loop_header_branch
    %18 = sbr.rel (%p16) target = $region8
  $region5: #{_lambda_.1} parent=0 // loop_body
    %s20 = ssub.s32 %s15, 1
    %s21 = ssub.s32 %s15, 2
    %s22 = sadd.s32 %s15, 1
    %s23 = ssub.s32 %s15, %s22
    %p24 = scmp.eq.s32.totalorder %s23, 0
    %s26 = sadd.s32 %s25, 1
    %s27 = scalar_select %p24, %s25, %s26
    %p30 = pneg %p24
    %p31 = scmp.eq.s32.totalorder %s15, 1
    %p32 = por %p30, %p31
    %p33 = scmp.ne.s32.totalorder %s25, %s28
    %p34 = scmp.eq.s32.totalorder %s15, 0
    %p35 = por %p33, %p34
    %p36 = scmp.ne.s32.totalorder %s25, %s28
    %p37 = scmp.eq.s32.totalorder %s20, 1
    %p38 = por %p36, %p37
    %p39 = scmp.ne.s32.totalorder %s28, %s29
    %p40 = scmp.eq.s32.totalorder %s20, 0
    %p41 = por %p39, %p40
    %p42 = scmp.ne.s32.totalorder %s28, %s29
    %p43 = scmp.eq.s32.totalorder %s21, 1
    %p44 = por %p42, %p43
    %p46 = scmp.ne.s32.totalorder %s29, %s45
    %p47 = scmp.eq.s32.totalorder %s21, 0
    %p48 = por %p46, %p47
    %s50 = sadd.s32 %s49, 1
    %p53 = scmp.eq.s32.totalorder %s15, 1
    %p54 = scmp.ne.s32.totalorder %s49, %s51
    %p55 = scmp.eq.s32.totalorder %s15, 0
    %p56 = por %p54, %p55
    %p57 = scmp.ne.s32.totalorder %s49, %s51
    %p58 = scmp.eq.s32.totalorder %s20, 1
    %p59 = por %p57, %p58
    %p60 = scmp.ne.s32.totalorder %s51, %s52
    %p61 = scmp.eq.s32.totalorder %s20, 0
    %p62 = por %p60, %p61
    %p63 = scmp.ne.s32.totalorder %s51, %s52
    %p64 = scmp.eq.s32.totalorder %s21, 1
    %p65 = por %p63, %p64
    %p67 = scmp.ne.s32.totalorder %s52, %s66
    %p68 = scmp.eq.s32.totalorder %s21, 0
    %p69 = por %p67, %p68
    %s71 = sadd.s32 %s70, 1
    %p74 = scmp.eq.s32.totalorder %s15, 1
    %p75 = scmp.ne.s32.totalorder %s70, %s72
    %p76 = scmp.eq.s32.totalorder %s15, 0
    %p77 = por %p75, %p76
    %p78 = scmp.ne.s32.totalorder %s70, %s72
    %p79 = scmp.eq.s32.totalorder %s20, 1
    %p80 = por %p78, %p79
    %p81 = scmp.ne.s32.totalorder %s72, %s73
    %p82 = scmp.eq.s32.totalorder %s20, 0
    %p83 = por %p81, %p82
    %p84 = scmp.ne.s32.totalorder %s72, %s73
    %p85 = scmp.eq.s32.totalorder %s21, 1
    %p86 = por %p84, %p85
    %p88 = scmp.ne.s32.totalorder %s73, %s87
    %p89 = scmp.eq.s32.totalorder %s21, 0
    %p90 = por %p88, %p89
    %s92 = sadd.s32 %s91, 1
    %p95 = scmp.eq.s32.totalorder %s15, 1
    %p96 = scmp.ne.s32.totalorder %s91, %s93
    %p97 = scmp.eq.s32.totalorder %s15, 0
    %p98 = por %p96, %p97
    %p99 = scmp.ne.s32.totalorder %s91, %s93
    %p100 = scmp.eq.s32.totalorder %s20, 1
    %p101 = por %p99, %p100
    %p102 = scmp.ne.s32.totalorder %s93, %s94
    %p103 = scmp.eq.s32.totalorder %s20, 0
    %p104 = por %p102, %p103
    %p105 = scmp.ne.s32.totalorder %s93, %s94
    %p106 = scmp.eq.s32.totalorder %s21, 1
    %p107 = por %p105, %p106
    %p109 = scmp.ne.s32.totalorder %s94, %s108
    %p110 = scmp.eq.s32.totalorder %s21, 0
    %p111 = por %p109, %p110
    %s113 = sadd.s32 %s112, 1
    %p116 = scmp.eq.s32.totalorder %s15, 1
    %p117 = scmp.ne.s32.totalorder %s112, %s114
    %p118 = scmp.eq.s32.totalorder %s15, 0
    %p119 = por %p117, %p118
    %p120 = scmp.ne.s32.totalorder %s112, %s114
    %p121 = scmp.eq.s32.totalorder %s20, 1
    %p122 = por %p120, %p121
    %p123 = scmp.ne.s32.totalorder %s114, %s115
    %p124 = scmp.eq.s32.totalorder %s20, 0
    %p125 = por %p123, %p124
    %p126 = scmp.ne.s32.totalorder %s114, %s115
    %p127 = scmp.eq.s32.totalorder %s21, 1
    %p128 = por %p126, %p127
    %p130 = scmp.ne.s32.totalorder %s115, %s129
    %p131 = scmp.eq.s32.totalorder %s21, 0
    %p132 = por %p130, %p131
    %s134 = sadd.s32 %s133, 1
    %p137 = scmp.eq.s32.totalorder %s15, 1
    %p138 = scmp.ne.s32.totalorder %s133, %s135
    %p139 = scmp.eq.s32.totalorder %s15, 0
    %p140 = por %p138, %p139
    %p141 = scmp.ne.s32.totalorder %s133, %s135
    %p142 = scmp.eq.s32.totalorder %s20, 1
    %p143 = por %p141, %p142
    %p144 = scmp.ne.s32.totalorder %s135, %s136
    %p145 = scmp.eq.s32.totalorder %s20, 0
    %p146 = por %p144, %p145
    %p147 = scmp.ne.s32.totalorder %s135, %s136
    %p148 = scmp.eq.s32.totalorder %s21, 1
    %p149 = por %p147, %p148
    %p151 = scmp.ne.s32.totalorder %s136, %s150
    %p152 = scmp.eq.s32.totalorder %s21, 0
    %p153 = por %p151, %p152
    %s155 = sadd.s32 %s154, 1
    %p158 = scmp.eq.s32.totalorder %s15, 1
    %p159 = scmp.ne.s32.totalorder %s154, %s156
    %p160 = scmp.eq.s32.totalorder %s15, 0
    %p161 = por %p159, %p160
    %p162 = scmp.ne.s32.totalorder %s154, %s156
    %p163 = scmp.eq.s32.totalorder %s20, 1
    %p164 = por %p162, %p163
    %p165 = scmp.ne.s32.totalorder %s156, %s157
    %p166 = scmp.eq.s32.totalorder %s20, 0
    %p167 = por %p165, %p166
    %p168 = scmp.ne.s32.totalorder %s156, %s157
    %p169 = scmp.eq.s32.totalorder %s21, 1
    %p170 = por %p168, %p169
    %p172 = scmp.ne.s32.totalorder %s157, %s171
    %p173 = scmp.eq.s32.totalorder %s21, 0
    %p174 = por %p172, %p173
    %s175 = ssub.s32 %s15, %s22
    %p176 = scmp.eq.s32.totalorder %s175, 0
    %s178 = sadd.s32 %s177, 1
    %s179 = scalar_select %p176, %s177, %s178
    %p182 = pneg %p176
    %p183 = scmp.eq.s32.totalorder %s15, 1
    %p184 = por %p182, %p183
    %p185 = scmp.ne.s32.totalorder %s177, %s180
    %p186 = scmp.eq.s32.totalorder %s15, 0
    %p187 = por %p185, %p186
    %p188 = scmp.ne.s32.totalorder %s177, %s180
    %p189 = scmp.eq.s32.totalorder %s20, 1
    %p190 = por %p188, %p189
    %p191 = scmp.ne.s32.totalorder %s180, %s181
    %p192 = scmp.eq.s32.totalorder %s20, 0
    %p193 = por %p191, %p192
    %p194 = scmp.ne.s32.totalorder %s180, %s181
    %p195 = scmp.eq.s32.totalorder %s21, 1
    %p196 = por %p194, %p195
    %p198 = scmp.ne.s32.totalorder %s181, %s197
    %p199 = scmp.eq.s32.totalorder %s21, 0
    %p200 = por %p198, %p199
    %p201 = scmp.le.s32.totalorder 1, %s15
    %p202 = scmp.lt.s32.totalorder %s15, 3
    %p203 = pnand %p201, %p202
    %p204 = pneg %p203
    // Predicated region
    $region9: #{_lambda_.1} parent=5 // pred_check
      _
    $region10: #{_lambda_.1} parent=5 // pred_check_branch
      %206 = sbr.rel (%p203) target = $region12
    $region11: #{_lambda_.1} parent=5 // pred_region
      %s207 = ssub.s32 %s15, 1
      // Predicated region
      $region13: #{_lambda_.1} parent=11 // pred_check
        %p208 = pneg %p62
      $region14: #{_lambda_.1} parent=11 // pred_check_branch
        %210 = sbr.rel (%p208) target = $region16
      $region15: #{_lambda_.1} parent=11 // pred_region
        _
      $region16: #{_lambda_.1} parent=11 // pred_fallthru
        _
      // Predicated region
      $region17: #{_lambda_.1} parent=11 // pred_check
        %p211 = pneg %p83
      $region18: #{_lambda_.1} parent=11 // pred_check_branch
        %213 = sbr.rel (%p211) target = $region20
      $region19: #{_lambda_.1} parent=11 // pred_region
        _
      $region20: #{_lambda_.1} parent=11 // pred_fallthru
        _
      // Predicated region
      $region21: #{_lambda_.1} parent=11 // pred_check
        %p214 = pneg %p104
      $region22: #{_lambda_.1} parent=11 // pred_check_branch
        %216 = sbr.rel (%p214) target = $region24
      $region23: #{_lambda_.1} parent=11 // pred_region
        _
      $region24: #{_lambda_.1} parent=11 // pred_fallthru
        _
      // Predicated region
      $region25: #{_lambda_.1} parent=11 // pred_check
        %p217 = pneg %p125
      $region26: #{_lambda_.1} parent=11 // pred_check_branch
        %219 = sbr.rel (%p217) target = $region28
      $region27: #{_lambda_.1} parent=11 // pred_region
        _
      $region28: #{_lambda_.1} parent=11 // pred_fallthru
        _
      // Predicated region
      $region29: #{_lambda_.1} parent=11 // pred_check
        %p220 = pneg %p146
      $region30: #{_lambda_.1} parent=11 // pred_check_branch
        %222 = sbr.rel (%p220) target = $region32
      $region31: #{_lambda_.1} parent=11 // pred_region
        _
      $region32: #{_lambda_.1} parent=11 // pred_fallthru
        _
      // Predicated region
      $region33: #{_lambda_.1} parent=11 // pred_check
        %p223 = pneg %p167
      $region34: #{_lambda_.1} parent=11 // pred_check_branch
        %225 = sbr.rel (%p223) target = $region36
      $region35: #{_lambda_.1} parent=11 // pred_region
        _
      $region36: #{_lambda_.1} parent=11 // pred_fallthru
        _
    $region12: #{_lambda_.1} parent=5 // pred_fallthru
      _
    %p226 = scmp.lt.s32.totalorder %s15, 2
    // Predicated region
    $region37: #{_lambda_.1} parent=5 // pred_check
      %p227 = pneg %p226
    $region38: #{_lambda_.1} parent=5 // pred_check_branch
      %229 = sbr.rel (%p227) target = $region40
    $region39: #{_lambda_.1} parent=5 // pred_region
      // Predicated region
      $region41: #{_lambda_.1} parent=39 // pred_check
        %p230 = pneg %p35
      $region42: #{_lambda_.1} parent=39 // pred_check_branch
        %232 = sbr.rel (%p230) target = $region44
      $region43: #{_lambda_.1} parent=39 // pred_region
        %s233 = smul.u32 16, %s15
        %p234 = scmp.lt.s32.totalorder %s233, 31
        %s235 = scalar_select %p234, %s233, 31
        %s236 = smul.addr %s235, 8
        %s237 = scalar_lea.vmem %s0, %s236
        %s238 = smul.u32 16, %s15
      $region44: #{_lambda_.1} parent=39 // pred_fallthru
        _
    $region40: #{_lambda_.1} parent=5 // pred_fallthru
      _
    %p239 = scmp.le.s32.totalorder 1, %s15
    %p240 = scmp.lt.s32.totalorder %s15, 3
    %p241 = pnand %p239, %p240
    %p242 = pneg %p241
    // Predicated region
    $region45: #{_lambda_.1} parent=5 // pred_check
      _
    $region46: #{_lambda_.1} parent=5 // pred_check_branch
      %244 = sbr.rel (%p241) target = $region48
    $region47: #{_lambda_.1} parent=5 // pred_region
      %s245 = ssub.s32 %s15, 1
      %s246 = smul.u32 16, %s20
      %p247 = scmp.lt.s32.totalorder %s246, 31
      %s248 = scalar_select %p247, %s246, 31
      %s249 = smul.addr %s248, 8
      %s250 = scalar_lea.vmem %s0, %s249
      %p251 = pneg %p41
      %p252 = pneg %p38
      %p253 = pneg %p62
      %p254 = pneg %p59
      %p255 = pneg %p83
      %p256 = pneg %p80
      %p257 = pneg %p104
      %p258 = pneg %p101
      %p259 = pneg %p125
      %p260 = pneg %p122
      %p261 = pneg %p146
      %p262 = pneg %p143
      %p263 = pneg %p167
      %p264 = pneg %p164
      %p265 = pneg %p193
      %p266 = pneg %p190
      %p267 = scmp.lt.s32.totalorder %s20, 1
      %s268 = scalar_select %p267, %s20, 1
      %s269 = smul.addr %s268, 8
      %s270 = scalar_lea.vmem %s7, %s269
      %s271 = smul.u32 16, %s20
      %p272 = scmp.lt.s32.totalorder %s271, 31
      %s273 = scalar_select %p272, %s271, 31
      %s274 = smul.addr %s273, 8
      %s275 = scalar_lea.vmem %s0, %s274
      %s276 = smul.u32 16, %s20
      %p277 = scmp.lt.s32.totalorder %s20, 1
      %s278 = scalar_select %p277, %s20, 1
      %s279 = smul.addr %s278, 8
      %s280 = scalar_lea.vmem %s7, %s279
      %v282 = vld [vmem:[%s275] sm:$0xff]
      %v283 = vld [vmem:[%s275 + $0x8] sm:$0xff]
      %v284 = vld [vmem:[%s275 + $0x10] sm:$0xff]
      %v285 = vld [vmem:[%s275 + $0x18] sm:$0xff]
      %v286 = vld [vmem:[%s275 + $0x20] sm:$0xff]
      %v287 = vld [vmem:[%s275 + $0x28] sm:$0xff]
      %v288 = vld [vmem:[%s275 + $0x30] sm:$0xff]
      %v289 = vld [vmem:[%s275 + $0x38] sm:$0xff]
      %v290 = vld [vmem:[%s275 + $0x40] sm:$0xff]
      %v291 = vld [vmem:[%s275 + $0x48] sm:$0xff]
      %v292 = vld [vmem:[%s275 + $0x50] sm:$0xff]
      %v293 = vld [vmem:[%s275 + $0x58] sm:$0xff]
      %v294 = vld [vmem:[%s275 + $0x60] sm:$0xff]
      %v295 = vld [vmem:[%s275 + $0x68] sm:$0xff]
      %v296 = vld [vmem:[%s275 + $0x70] sm:$0xff]
      %v297 = vld [vmem:[%s275 + $0x78] sm:$0xff]
      %v298 = vlaneseq
      %v299 = vshrl.u32 %v298, 7
      %v300 = vadd.s32 %v299, 8
      %v301 = vadd.s32 %v299, 16
      %v302 = vadd.s32 %v299, 24
      %v303 = vadd.s32 %v299, 32
      %v304 = vadd.s32 %v299, 40
      %v305 = vadd.s32 %v299, 48
      %v306 = vadd.s32 %v299, 56
      %v307 = vadd.s32 %v299, 64
      %v308 = vadd.s32 %v299, 72
      %v309 = vadd.s32 %v299, 80
      %v310 = vadd.s32 %v299, 88
      %v311 = vadd.s32 %v299, 96
      %v312 = vadd.s32 %v299, 104
      %v313 = vadd.s32 %v299, 112
      %v314 = vadd.s32 %v299, 120
      %vm315 = vcmp.lt.s32.totalorder %v299, 0
      %v316 = vsub.s32 0, %v299
      %v317 = vsel %vm315, %v316, %v299
      %v318 = vshrl.u32 %v317, 4
      %v319 = vand.u32 %v317, 15
      %v320 = vsub.s32 0, %v319
      %v321 = vsel %vm315, %v320, %v319
      %vm322 = vcmp.lt.s32.totalorder %v300, 0
      %v323 = vsub.s32 0, %v300
      %v324 = vsel %vm322, %v323, %v300
      %v325 = vshrl.u32 %v324, 4
      %v326 = vand.u32 %v324, 15
      %v327 = vsub.s32 0, %v326
      %v328 = vsel %vm322, %v327, %v326
      %vm329 = vcmp.lt.s32.totalorder %v301, 0
      %v330 = vsub.s32 0, %v301
      %v331 = vsel %vm329, %v330, %v301
      %v332 = vshrl.u32 %v331, 4
      %v333 = vand.u32 %v331, 15
      %v334 = vsub.s32 0, %v333
      %v335 = vsel %vm329, %v334, %v333
      %vm336 = vcmp.lt.s32.totalorder %v302, 0
      %v337 = vsub.s32 0, %v302
      %v338 = vsel %vm336, %v337, %v302
      %v339 = vshrl.u32 %v338, 4
      %v340 = vand.u32 %v338, 15
      %v341 = vsub.s32 0, %v340
      %v342 = vsel %vm336, %v341, %v340
      %vm343 = vcmp.lt.s32.totalorder %v303, 0
      %v344 = vsub.s32 0, %v303
      %v345 = vsel %vm343, %v344, %v303
      %v346 = vshrl.u32 %v345, 4
      %v347 = vand.u32 %v345, 15
      %v348 = vsub.s32 0, %v347
      %v349 = vsel %vm343, %v348, %v347
      %vm350 = vcmp.lt.s32.totalorder %v304, 0
      %v351 = vsub.s32 0, %v304
      %v352 = vsel %vm350, %v351, %v304
      %v353 = vshrl.u32 %v352, 4
      %v354 = vand.u32 %v352, 15
      %v355 = vsub.s32 0, %v354
      %v356 = vsel %vm350, %v355, %v354
      %vm357 = vcmp.lt.s32.totalorder %v305, 0
      %v358 = vsub.s32 0, %v305
      %v359 = vsel %vm357, %v358, %v305
      %v360 = vshrl.u32 %v359, 4
      %v361 = vand.u32 %v359, 15
      %v362 = vsub.s32 0, %v361
      %v363 = vsel %vm357, %v362, %v361
      %vm364 = vcmp.lt.s32.totalorder %v306, 0
      %v365 = vsub.s32 0, %v306
      %v366 = vsel %vm364, %v365, %v306
      %v367 = vshrl.u32 %v366, 4
      %v368 = vand.u32 %v366, 15
      %v369 = vsub.s32 0, %v368
      %v370 = vsel %vm364, %v369, %v368
      %vm371 = vcmp.lt.s32.totalorder %v307, 0
      %v372 = vsub.s32 0, %v307
      %v373 = vsel %vm371, %v372, %v307
      %v374 = vshrl.u32 %v373, 4
      %v375 = vand.u32 %v373, 15
      %v376 = vsub.s32 0, %v375
      %v377 = vsel %vm371, %v376, %v375
      %vm378 = vcmp.lt.s32.totalorder %v308, 0
      %v379 = vsub.s32 0, %v308
      %v380 = vsel %vm378, %v379, %v308
      %v381 = vshrl.u32 %v380, 4
      %v382 = vand.u32 %v380, 15
      %v383 = vsub.s32 0, %v382
      %v384 = vsel %vm378, %v383, %v382
      %vm385 = vcmp.lt.s32.totalorder %v309, 0
      %v386 = vsub.s32 0, %v309
      %v387 = vsel %vm385, %v386, %v309
      %v388 = vshrl.u32 %v387, 4
      %v389 = vand.u32 %v387, 15
      %v390 = vsub.s32 0, %v389
      %v391 = vsel %vm385, %v390, %v389
      %vm392 = vcmp.lt.s32.totalorder %v310, 0
      %v393 = vsub.s32 0, %v310
      %v394 = vsel %vm392, %v393, %v310
      %v395 = vshrl.u32 %v394, 4
      %v396 = vand.u32 %v394, 15
      %v397 = vsub.s32 0, %v396
      %v398 = vsel %vm392, %v397, %v396
      %vm399 = vcmp.lt.s32.totalorder %v311, 0
      %v400 = vsub.s32 0, %v311
      %v401 = vsel %vm399, %v400, %v311
      %v402 = vshrl.u32 %v401, 4
      %v403 = vand.u32 %v401, 15
      %v404 = vsub.s32 0, %v403
      %v405 = vsel %vm399, %v404, %v403
      %vm406 = vcmp.lt.s32.totalorder %v312, 0
      %v407 = vsub.s32 0, %v312
      %v408 = vsel %vm406, %v407, %v312
      %v409 = vshrl.u32 %v408, 4
      %v410 = vand.u32 %v408, 15
      %v411 = vsub.s32 0, %v410
      %v412 = vsel %vm406, %v411, %v410
      %vm413 = vcmp.lt.s32.totalorder %v313, 0
      %v414 = vsub.s32 0, %v313
      %v415 = vsel %vm413, %v414, %v313
      %v416 = vshrl.u32 %v415, 4
      %v417 = vand.u32 %v415, 15
      %v418 = vsub.s32 0, %v417
      %v419 = vsel %vm413, %v418, %v417
      %vm420 = vcmp.lt.s32.totalorder %v314, 0
      %v421 = vsub.s32 0, %v314
      %v422 = vsel %vm420, %v421, %v314
      %v423 = vshrl.u32 %v422, 4
      %v424 = vand.u32 %v422, 15
      %v425 = vsub.s32 0, %v424
      %v426 = vsel %vm420, %v425, %v424
      %vm427 = vcmp.ne.s32.totalorder %v321, 0
      %vm428 = vcmp.ne.s32.totalorder %v328, 0
      %vm429 = vcmp.ne.s32.totalorder %v335, 0
      %vm430 = vcmp.ne.s32.totalorder %v342, 0
      %vm431 = vcmp.ne.s32.totalorder %v349, 0
      %vm432 = vcmp.ne.s32.totalorder %v356, 0
      %vm433 = vcmp.ne.s32.totalorder %v363, 0
      %vm434 = vcmp.ne.s32.totalorder %v370, 0
      %vm435 = vcmp.ne.s32.totalorder %v377, 0
      %vm436 = vcmp.ne.s32.totalorder %v384, 0
      %vm437 = vcmp.ne.s32.totalorder %v391, 0
      %vm438 = vcmp.ne.s32.totalorder %v398, 0
      %vm439 = vcmp.ne.s32.totalorder %v405, 0
      %vm440 = vcmp.ne.s32.totalorder %v412, 0
      %vm441 = vcmp.ne.s32.totalorder %v419, 0
      %vm442 = vcmp.ne.s32.totalorder %v426, 0
      %vm443 = vcmp.lt.s32.totalorder %v321, 0
      %vm444 = vcmp.lt.s32.totalorder %v328, 0
      %vm445 = vcmp.lt.s32.totalorder %v335, 0
      %vm446 = vcmp.lt.s32.totalorder %v342, 0
      %vm447 = vcmp.lt.s32.totalorder %v349, 0
      %vm448 = vcmp.lt.s32.totalorder %v356, 0
      %vm449 = vcmp.lt.s32.totalorder %v363, 0
      %vm450 = vcmp.lt.s32.totalorder %v370, 0
      %vm451 = vcmp.lt.s32.totalorder %v377, 0
      %vm452 = vcmp.lt.s32.totalorder %v384, 0
      %vm453 = vcmp.lt.s32.totalorder %v391, 0
      %vm454 = vcmp.lt.s32.totalorder %v398, 0
      %vm455 = vcmp.lt.s32.totalorder %v405, 0
      %vm456 = vcmp.lt.s32.totalorder %v412, 0
      %vm457 = vcmp.lt.s32.totalorder %v419, 0
      %vm458 = vcmp.lt.s32.totalorder %v426, 0
      %vm459 = vmand %vm443, %vm427
      %vm460 = vmand %vm444, %vm428
      %vm461 = vmand %vm445, %vm429
      %vm462 = vmand %vm446, %vm430
      %vm463 = vmand %vm447, %vm431
      %vm464 = vmand %vm448, %vm432
      %vm465 = vmand %vm449, %vm433
      %vm466 = vmand %vm450, %vm434
      %vm467 = vmand %vm451, %vm435
      %vm468 = vmand %vm452, %vm436
      %vm469 = vmand %vm453, %vm437
      %vm470 = vmand %vm454, %vm438
      %vm471 = vmand %vm455, %vm439
      %vm472 = vmand %vm456, %vm440
      %vm473 = vmand %vm457, %vm441
      %vm474 = vmand %vm458, %vm442
      %v475 = vadd.s32 %v321, 16
      %v476 = vadd.s32 %v328, 16
      %v477 = vadd.s32 %v335, 16
      %v478 = vadd.s32 %v342, 16
      %v479 = vadd.s32 %v349, 16
      %v480 = vadd.s32 %v356, 16
      %v481 = vadd.s32 %v363, 16
      %v482 = vadd.s32 %v370, 16
      %v483 = vadd.s32 %v377, 16
      %v484 = vadd.s32 %v384, 16
      %v485 = vadd.s32 %v391, 16
      %v486 = vadd.s32 %v398, 16
      %v487 = vadd.s32 %v405, 16
      %v488 = vadd.s32 %v412, 16
      %v489 = vadd.s32 %v419, 16
      %v490 = vadd.s32 %v426, 16
      %v491 = vsel %vm459, %v475, %v321
      %v492 = vsel %vm460, %v476, %v328
      %v493 = vsel %vm461, %v477, %v335
      %v494 = vsel %vm462, %v478, %v342
      %v495 = vsel %vm463, %v479, %v349
      %v496 = vsel %vm464, %v480, %v356
      %v497 = vsel %vm465, %v481, %v363
      %v498 = vsel %vm466, %v482, %v370
      %v499 = vsel %vm467, %v483, %v377
      %v500 = vsel %vm468, %v484, %v384
      %v501 = vsel %vm469, %v485, %v391
      %v502 = vsel %vm470, %v486, %v398
      %v503 = vsel %vm471, %v487, %v405
      %v504 = vsel %vm472, %v488, %v412
      %v505 = vsel %vm473, %v489, %v419
      %v506 = vsel %vm474, %v490, %v426
      %v507 = vrot.slane %v282, 7
      %v508 = vrot.slane %v283, 7
      %v509 = vrot.slane %v284, 7
      %v510 = vrot.slane %v285, 7
      %v511 = vrot.slane %v286, 7
      %v512 = vrot.slane %v287, 7
      %v513 = vrot.slane %v288, 7
      %v514 = vrot.slane %v289, 7
      %v515 = vrot.slane %v290, 7
      %v516 = vrot.slane %v291, 7
      %v517 = vrot.slane %v292, 7
      %v518 = vrot.slane %v293, 7
      %v519 = vrot.slane %v294, 7
      %v520 = vrot.slane %v295, 7
      %v521 = vrot.slane %v296, 7
      %v522 = vrot.slane %v297, 7
      %vm523 = vcmp.lt.s32.totalorder %v299, 1
      %v524 = vsel %vm523, %v521, %v522
      %v525 = vsel %vm523, %v520, %v521
      %v526 = vsel %vm523, %v519, %v520
      %v527 = vsel %vm523, %v518, %v519
      %v528 = vsel %vm523, %v517, %v518
      %v529 = vsel %vm523, %v516, %v517
      %v530 = vsel %vm523, %v515, %v516
      %v531 = vsel %vm523, %v514, %v515
      %v532 = vsel %vm523, %v513, %v514
      %v533 = vsel %vm523, %v512, %v513
      %v534 = vsel %vm523, %v511, %v512
      %v535 = vsel %vm523, %v510, %v511
      %v536 = vsel %vm523, %v509, %v510
      %v537 = vsel %vm523, %v508, %v509
      %v538 = vsel %vm523, %v507, %v508
      %v539 = vsel %vm523, %v522, %v507
      %vm540 = vcmp.ge.s32.totalorder %v491, 1
      %vm541 = vcmp.ge.s32.totalorder %v492, 1
      %vm542 = vcmp.ge.s32.totalorder %v493, 1
      %vm543 = vcmp.ge.s32.totalorder %v494, 1
      %vm544 = vcmp.ge.s32.totalorder %v495, 1
      %vm545 = vcmp.ge.s32.totalorder %v496, 1
      %vm546 = vcmp.ge.s32.totalorder %v497, 1
      %vm547 = vcmp.ge.s32.totalorder %v498, 1
      %vm548 = vcmp.ge.s32.totalorder %v499, 1
      %vm549 = vcmp.ge.s32.totalorder %v500, 1
      %vm550 = vcmp.ge.s32.totalorder %v501, 1
      %vm551 = vcmp.ge.s32.totalorder %v502, 1
      %vm552 = vcmp.ge.s32.totalorder %v503, 1
      %vm553 = vcmp.ge.s32.totalorder %v504, 1
      %vm554 = vcmp.ge.s32.totalorder %v505, 1
      %vm555 = vcmp.ge.s32.totalorder %v506, 1
      %v556 = vsel %vm540, 1, 0
      %v557 = vsel %vm541, 1, 0
      %v558 = vsel %vm542, 1, 0
      %v559 = vsel %vm543, 1, 0
      %v560 = vsel %vm544, 1, 0
      %v561 = vsel %vm545, 1, 0
      %v562 = vsel %vm546, 1, 0
      %v563 = vsel %vm547, 1, 0
      %v564 = vsel %vm548, 1, 0
      %v565 = vsel %vm549, 1, 0
      %v566 = vsel %vm550, 1, 0
      %v567 = vsel %vm551, 1, 0
      %v568 = vsel %vm552, 1, 0
      %v569 = vsel %vm553, 1, 0
      %v570 = vsel %vm554, 1, 0
      %v571 = vsel %vm555, 1, 0
      %vm572 = vcmp.eq.s32.totalorder %v556, 1
      %vm573 = vcmp.eq.s32.totalorder %v557, 1
      %vm574 = vcmp.eq.s32.totalorder %v558, 1
      %vm575 = vcmp.eq.s32.totalorder %v559, 1
      %vm576 = vcmp.eq.s32.totalorder %v560, 1
      %vm577 = vcmp.eq.s32.totalorder %v561, 1
      %vm578 = vcmp.eq.s32.totalorder %v562, 1
      %vm579 = vcmp.eq.s32.totalorder %v563, 1
      %vm580 = vcmp.eq.s32.totalorder %v564, 1
      %vm581 = vcmp.eq.s32.totalorder %v565, 1
      %vm582 = vcmp.eq.s32.totalorder %v566, 1
      %vm583 = vcmp.eq.s32.totalorder %v567, 1
      %vm584 = vcmp.eq.s32.totalorder %v568, 1
      %vm585 = vcmp.eq.s32.totalorder %v569, 1
      %vm586 = vcmp.eq.s32.totalorder %v570, 1
      %vm587 = vcmp.eq.s32.totalorder %v571, 1
      %v588 = vsel %vm572, %v539, 0.0
      %v589 = vsel %vm573, %v538, 0.0
      %v590 = vsel %vm574, %v537, 0.0
      %v591 = vsel %vm575, %v536, 0.0
      %v592 = vsel %vm576, %v535, 0.0
      %v593 = vsel %vm577, %v534, 0.0
      %v594 = vsel %vm578, %v533, 0.0
      %v595 = vsel %vm579, %v532, 0.0
      %v596 = vsel %vm580, %v531, 0.0
      %v597 = vsel %vm581, %v530, 0.0
      %v598 = vsel %vm582, %v529, 0.0
      %v599 = vsel %vm583, %v528, 0.0
      %v600 = vsel %vm584, %v527, 0.0
      %v601 = vsel %vm585, %v526, 0.0
      %v602 = vsel %vm586, %v525, 0.0
      %v603 = vsel %vm587, %v524, 0.0
      %v604 = vrot.slane %v282, 1
      %v605 = vrot.slane %v283, 1
      %v606 = vrot.slane %v284, 1
      %v607 = vrot.slane %v285, 1
      %v608 = vrot.slane %v286, 1
      %v609 = vrot.slane %v287, 1
      %v610 = vrot.slane %v288, 1
      %v611 = vrot.slane %v289, 1
      %v612 = vrot.slane %v290, 1
      %v613 = vrot.slane %v291, 1
      %v614 = vrot.slane %v292, 1
      %v615 = vrot.slane %v293, 1
      %v616 = vrot.slane %v294, 1
      %v617 = vrot.slane %v295, 1
      %v618 = vrot.slane %v296, 1
      %v619 = vrot.slane %v297, 1
      %vm620 = vcmp.lt.s32.totalorder %v299, 7
      %v621 = vsel %vm620, %v618, %v619
      %v622 = vsel %vm620, %v617, %v618
      %v623 = vsel %vm620, %v616, %v617
      %v624 = vsel %vm620, %v615, %v616
      %v625 = vsel %vm620, %v614, %v615
      %v626 = vsel %vm620, %v613, %v614
      %v627 = vsel %vm620, %v612, %v613
      %v628 = vsel %vm620, %v611, %v612
      %v629 = vsel %vm620, %v610, %v611
      %v630 = vsel %vm620, %v609, %v610
      %v631 = vsel %vm620, %v608, %v609
      %v632 = vsel %vm620, %v607, %v608
      %v633 = vsel %vm620, %v606, %v607
      %v634 = vsel %vm620, %v605, %v606
      %v635 = vsel %vm620, %v604, %v605
      %v636 = vsel %vm620, %v619, %v604
      %vm637 = vcmp.lt.s32.totalorder %v491, 15
      %vm638 = vcmp.lt.s32.totalorder %v492, 15
      %vm639 = vcmp.lt.s32.totalorder %v493, 15
      %vm640 = vcmp.lt.s32.totalorder %v494, 15
      %vm641 = vcmp.lt.s32.totalorder %v495, 15
      %vm642 = vcmp.lt.s32.totalorder %v496, 15
      %vm643 = vcmp.lt.s32.totalorder %v497, 15
      %vm644 = vcmp.lt.s32.totalorder %v498, 15
      %vm645 = vcmp.lt.s32.totalorder %v499, 15
      %vm646 = vcmp.lt.s32.totalorder %v500, 15
      %vm647 = vcmp.lt.s32.totalorder %v501, 15
      %vm648 = vcmp.lt.s32.totalorder %v502, 15
      %vm649 = vcmp.lt.s32.totalorder %v503, 15
      %vm650 = vcmp.lt.s32.totalorder %v504, 15
      %vm651 = vcmp.lt.s32.totalorder %v505, 15
      %vm652 = vcmp.lt.s32.totalorder %v506, 15
      %v653 = vsel %vm637, 1, 0
      %v654 = vsel %vm638, 1, 0
      %v655 = vsel %vm639, 1, 0
      %v656 = vsel %vm640, 1, 0
      %v657 = vsel %vm641, 1, 0
      %v658 = vsel %vm642, 1, 0
      %v659 = vsel %vm643, 1, 0
      %v660 = vsel %vm644, 1, 0
      %v661 = vsel %vm645, 1, 0
      %v662 = vsel %vm646, 1, 0
      %v663 = vsel %vm647, 1, 0
      %v664 = vsel %vm648, 1, 0
      %v665 = vsel %vm649, 1, 0
      %v666 = vsel %vm650, 1, 0
      %v667 = vsel %vm651, 1, 0
      %v668 = vsel %vm652, 1, 0
      %vm669 = vcmp.eq.s32.totalorder %v653, 1
      %vm670 = vcmp.eq.s32.totalorder %v654, 1
      %vm671 = vcmp.eq.s32.totalorder %v655, 1
      %vm672 = vcmp.eq.s32.totalorder %v656, 1
      %vm673 = vcmp.eq.s32.totalorder %v657, 1
      %vm674 = vcmp.eq.s32.totalorder %v658, 1
      %vm675 = vcmp.eq.s32.totalorder %v659, 1
      %vm676 = vcmp.eq.s32.totalorder %v660, 1
      %vm677 = vcmp.eq.s32.totalorder %v661, 1
      %vm678 = vcmp.eq.s32.totalorder %v662, 1
      %vm679 = vcmp.eq.s32.totalorder %v663, 1
      %vm680 = vcmp.eq.s32.totalorder %v664, 1
      %vm681 = vcmp.eq.s32.totalorder %v665, 1
      %vm682 = vcmp.eq.s32.totalorder %v666, 1
      %vm683 = vcmp.eq.s32.totalorder %v667, 1
      %vm684 = vcmp.eq.s32.totalorder %v668, 1
      %v685 = vsel %vm669, %v635, 0.0
      %v686 = vsel %vm670, %v634, 0.0
      %v687 = vsel %vm671, %v633, 0.0
      %v688 = vsel %vm672, %v632, 0.0
      %v689 = vsel %vm673, %v631, 0.0
      %v690 = vsel %vm674, %v630, 0.0
      %v691 = vsel %vm675, %v629, 0.0
      %v692 = vsel %vm676, %v628, 0.0
      %v693 = vsel %vm677, %v627, 0.0
      %v694 = vsel %vm678, %v626, 0.0
      %v695 = vsel %vm679, %v625, 0.0
      %v696 = vsel %vm680, %v624, 0.0
      %v697 = vsel %vm681, %v623, 0.0
      %v698 = vsel %vm682, %v622, 0.0
      %v699 = vsel %vm683, %v621, 0.0
      %v700 = vsel %vm684, %v636, 0.0
      %717 = vrot.lane.b32.xlu0 %v282, 4
      %v718 = vpop.permute.xlu0 %717
      %719 = vrot.lane.b32.xlu0 %v283, 4
      %v720 = vpop.permute.xlu0 %719
      %721 = vrot.lane.b32.xlu0 %v284, 4
      %v722 = vpop.permute.xlu0 %721
      %723 = vrot.lane.b32.xlu0 %v285, 4
      %v724 = vpop.permute.xlu0 %723
      %725 = vrot.lane.b32.xlu0 %v286, 4
      %v726 = vpop.permute.xlu0 %725
      %727 = vrot.lane.b32.xlu0 %v287, 4
      %v728 = vpop.permute.xlu0 %727
      %729 = vrot.lane.b32.xlu0 %v288, 4
      %v730 = vpop.permute.xlu0 %729
      %731 = vrot.lane.b32.xlu0 %v289, 4
      %v732 = vpop.permute.xlu0 %731
      %733 = vrot.lane.b32.xlu0 %v290, 4
      %v734 = vpop.permute.xlu0 %733
      %735 = vrot.lane.b32.xlu0 %v291, 4
      %v736 = vpop.permute.xlu0 %735
      %737 = vrot.lane.b32.xlu0 %v292, 4
      %v738 = vpop.permute.xlu0 %737
      %739 = vrot.lane.b32.xlu0 %v293, 4
      %v740 = vpop.permute.xlu0 %739
      %741 = vrot.lane.b32.xlu0 %v294, 4
      %v742 = vpop.permute.xlu0 %741
      %743 = vrot.lane.b32.xlu0 %v295, 4
      %v744 = vpop.permute.xlu0 %743
      %745 = vrot.lane.b32.xlu0 %v296, 4
      %v746 = vpop.permute.xlu0 %745
      %747 = vrot.lane.b32.xlu0 %v297, 4
      %v748 = vpop.permute.xlu0 %747
      %781 = vrot.lane.b32.xlu0 %v685, 8
      %v782 = vpop.permute.xlu0 %781
      %783 = vrot.lane.b32.xlu0 %v686, 8
      %v784 = vpop.permute.xlu0 %783
      %785 = vrot.lane.b32.xlu0 %v687, 8
      %v786 = vpop.permute.xlu0 %785
      %787 = vrot.lane.b32.xlu0 %v688, 8
      %v788 = vpop.permute.xlu0 %787
      %789 = vrot.lane.b32.xlu0 %v689, 8
      %v790 = vpop.permute.xlu0 %789
      %791 = vrot.lane.b32.xlu0 %v690, 8
      %v792 = vpop.permute.xlu0 %791
      %793 = vrot.lane.b32.xlu0 %v691, 8
      %v794 = vpop.permute.xlu0 %793
      %795 = vrot.lane.b32.xlu0 %v692, 8
      %v796 = vpop.permute.xlu0 %795
      %797 = vrot.lane.b32.xlu0 %v693, 8
      %v798 = vpop.permute.xlu0 %797
      %799 = vrot.lane.b32.xlu0 %v694, 8
      %v800 = vpop.permute.xlu0 %799
      %801 = vrot.lane.b32.xlu0 %v695, 8
      %v802 = vpop.permute.xlu0 %801
      %803 = vrot.lane.b32.xlu0 %v696, 8
      %v804 = vpop.permute.xlu0 %803
      %805 = vrot.lane.b32.xlu0 %v697, 8
      %v806 = vpop.permute.xlu0 %805
      %807 = vrot.lane.b32.xlu0 %v698, 8
      %v808 = vpop.permute.xlu0 %807
      %809 = vrot.lane.b32.xlu0 %v699, 8
      %v810 = vpop.permute.xlu0 %809
      %811 = vrot.lane.b32.xlu0 %v700, 8
      %v812 = vpop.permute.xlu0 %811
      %vm829 = vcmask 31744
      %v830 = vsel %vm829, %v588, %v718
      %v831 = vsel %vm829, %v589, %v720
      %v832 = vsel %vm829, %v590, %v722
      %v833 = vsel %vm829, %v591, %v724
      %v834 = vsel %vm829, %v592, %v726
      %v835 = vsel %vm829, %v593, %v728
      %v836 = vsel %vm829, %v594, %v730
      %v837 = vsel %vm829, %v595, %v732
      %v838 = vsel %vm829, %v596, %v734
      %v839 = vsel %vm829, %v597, %v736
      %v840 = vsel %vm829, %v598, %v738
      %v841 = vsel %vm829, %v599, %v740
      %v842 = vsel %vm829, %v600, %v742
      %v843 = vsel %vm829, %v601, %v744
      %v844 = vsel %vm829, %v602, %v746
      %v845 = vsel %vm829, %v603, %v748
      %vm846 = vcmask 64512
      %v847 = vsel %vm846, %v830, %v782
      %v848 = vsel %vm846, %v831, %v784
      %v849 = vsel %vm846, %v832, %v786
      %v850 = vsel %vm846, %v833, %v788
      %v851 = vsel %vm846, %v834, %v790
      %v852 = vsel %vm846, %v835, %v792
      %v853 = vsel %vm846, %v836, %v794
      %v854 = vsel %vm846, %v837, %v796
      %v855 = vsel %vm846, %v838, %v798
      %v856 = vsel %vm846, %v839, %v800
      %v857 = vsel %vm846, %v840, %v802
      %v858 = vsel %vm846, %v841, %v804
      %v859 = vsel %vm846, %v842, %v806
      %v860 = vsel %vm846, %v843, %v808
      %v861 = vsel %vm846, %v844, %v810
      %v862 = vsel %vm846, %v845, %v812
      %v863 = vpack.c.bf16 %v848, %v847
      %v864 = vpack.c.bf16 %v850, %v849
      %v865 = vpack.c.bf16 %v852, %v851
      %v866 = vpack.c.bf16 %v854, %v853
      %v867 = vpack.c.bf16 %v856, %v855
      %v868 = vpack.c.bf16 %v858, %v857
      %v869 = vpack.c.bf16 %v860, %v859
      %v870 = vpack.c.bf16 %v862, %v861
      %v871 = vld [vmem:[%s1] sm:$0xf]
      %v872 = vld [vmem:[%s1 + $0x4] sm:$0x3]
      %v873 = vld [vmem:[%s2] sm:$0x1]
      %v875 = vlaneseq
      %v876 = vshrl.u32 %v875, 7
      %v877 = vsub.s32 0, %v876
      %v878 = vrot.slane %v873, %v877
      %v882 = vunpack.c.l.b16 %v871
      %v883 = vunpack.c.l.b16 %v872
      %v884 = vpack.c.b16 %v883, %v882
      %vm885 = vcmask 97280
      %v887 = vsel %vm885, %v863, 0
      %v890 = vsel %vm885, %v864, 0
      %v893 = vsel %vm885, %v865, 0
      %v896 = vsel %vm885, %v866, 0
      %v899 = vsel %vm885, %v867, 0
      %v902 = vsel %vm885, %v868, 0
      %v905 = vsel %vm885, %v869, 0
      %v908 = vsel %vm885, %v870, 0
      %vm910 = vcmask 1045504
      %v912 = vsel %vm910, %v884, 0
      %914 = vmatprep.subr.bf16.mxu0 0
      %915 = vmatpush1.bf16.msra.mxu0 0
      %916 = vmatprep.subr.bf16.mxu0 0
      %917 = vmatpush1.bf16.msra.mxu0 0
      %918 = vmatprep.subr.bf16.mxu0 0
      %919 = vmatpush1.bf16.msra.mxu0 0
      %920 = vmatprep.subr.bf16.mxu0 0
      %921 = vmatpush1.bf16.msra.mxu0 0
      %922 = vmatprep.subr.bf16.mxu0 0
      %923 = vmatpush1.bf16.msra.mxu0 0
      %924 = vmatprep.subr.bf16.mxu0 0
      %925 = vmatpush1.bf16.msra.mxu0 0
      %926 = vmatprep.subr.bf16.mxu0 0
      %927 = vmatpush1.bf16.msra.mxu0 0
      %928 = vmatprep.subr.bf16.mxu0 0
      %929 = vmatpush1.bf16.msra.mxu0 %v912
      %930 = vmatprep.subr.bf16.mxu0 0
      %931 = vmatpush2.bf16.msra.mxu0 0
      %932 = vmatprep.subr.bf16.mxu0 0
      %933 = vmatpush2.bf16.msra.mxu0 0
      %934 = vmatprep.subr.bf16.mxu0 0
      %935 = vmatpush2.bf16.msra.mxu0 0
      %936 = vmatprep.subr.bf16.mxu0 0
      %937 = vmatpush2.bf16.msra.mxu0 0
      %938 = vmatprep.subr.bf16.mxu0 0
      %939 = vmatpush2.bf16.msra.mxu0 0
      %940 = vmatprep.subr.bf16.mxu0 0
      %941 = vmatpush2.bf16.msra.mxu0 0
      %942 = vmatprep.subr.bf16.mxu0 0
      %943 = vmatpush2.bf16.msra.mxu0 0
      %944 = vmatprep.subr.bf16.mxu0 0
      %945 = vmatpush2.bf16.msra.mxu0 0
      %946 = vmatprep.mubr.bf16.mxu0 0
      %947 = vmatmul.mubr.bf16.gmra.mxu0 %v887
      %v948 = vpop.f32.mrf.mxu0
      %v949 = vadd.f32 %v878, %v948
      %v950 = vpop.f32.mrf.mxu0
      %v951 = vpop.f32.mrf.mxu0
      %v952 = vadd.f32 %v878, %v951
      %v953 = vpop.f32.mrf.mxu0
      %954 = vmatprep.mubr.bf16.mxu0 0
      %955 = vmatmul.mubr.bf16.gmra.mxu0 %v890
      %v956 = vpop.f32.mrf.mxu0
      %v957 = vadd.f32 %v878, %v956
      %v958 = vpop.f32.mrf.mxu0
      %v959 = vpop.f32.mrf.mxu0
      %v960 = vadd.f32 %v878, %v959
      %v961 = vpop.f32.mrf.mxu0
      %962 = vmatprep.mubr.bf16.mxu0 0
      %963 = vmatmul.mubr.bf16.gmra.mxu0 %v893
      %v964 = vpop.f32.mrf.mxu0
      %v965 = vadd.f32 %v878, %v964
      %v966 = vpop.f32.mrf.mxu0
      %v967 = vpop.f32.mrf.mxu0
      %v968 = vadd.f32 %v878, %v967
      %v969 = vpop.f32.mrf.mxu0
      %970 = vmatprep.mubr.bf16.mxu0 0
      %971 = vmatmul.mubr.bf16.gmra.mxu0 %v896
      %v972 = vpop.f32.mrf.mxu0
      %v973 = vadd.f32 %v878, %v972
      %v974 = vpop.f32.mrf.mxu0
      %v975 = vpop.f32.mrf.mxu0
      %v976 = vadd.f32 %v878, %v975
      %v977 = vpop.f32.mrf.mxu0
      %978 = vmatprep.mubr.bf16.mxu0 0
      %979 = vmatmul.mubr.bf16.gmra.mxu0 %v899
      %v980 = vpop.f32.mrf.mxu0
      %v981 = vadd.f32 %v878, %v980
      %v982 = vpop.f32.mrf.mxu0
      %v983 = vpop.f32.mrf.mxu0
      %v984 = vadd.f32 %v878, %v983
      %v985 = vpop.f32.mrf.mxu0
      %986 = vmatprep.mubr.bf16.mxu0 0
      %987 = vmatmul.mubr.bf16.gmra.mxu0 %v902
      %v988 = vpop.f32.mrf.mxu0
      %v989 = vadd.f32 %v878, %v988
      %v990 = vpop.f32.mrf.mxu0
      %v991 = vpop.f32.mrf.mxu0
      %v992 = vadd.f32 %v878, %v991
      %v993 = vpop.f32.mrf.mxu0
      %994 = vmatprep.mubr.bf16.mxu0 0
      %995 = vmatmul.mubr.bf16.gmra.mxu0 %v905
      %v996 = vpop.f32.mrf.mxu0
      %v997 = vadd.f32 %v878, %v996
      %v998 = vpop.f32.mrf.mxu0
      %v999 = vpop.f32.mrf.mxu0
      %v1000 = vadd.f32 %v878, %v999
      %v1001 = vpop.f32.mrf.mxu0
      %1002 = vmatprep.mubr.bf16.mxu0 0
      %1003 = vmatmul.mubr.bf16.gmra.mxu0 %v908
      %v1004 = vpop.f32.mrf.mxu0
      %v1005 = vadd.f32 %v878, %v1004
      %v1006 = vpop.f32.mrf.mxu0
      %v1007 = vpop.f32.mrf.mxu0
      %v1008 = vadd.f32 %v878, %v1007
      %v1009 = vpop.f32.mrf.mxu0
      %1010 = vdwg.mxu0
      %v1011 = vmax.f32 %v949, 0.0
      %v1012 = vmax.f32 %v952, 0.0
      %v1013 = vmax.f32 %v957, 0.0
      %v1014 = vmax.f32 %v960, 0.0
      %v1015 = vmax.f32 %v965, 0.0
      %v1016 = vmax.f32 %v968, 0.0
      %v1017 = vmax.f32 %v973, 0.0
      %v1018 = vmax.f32 %v976, 0.0
      %v1019 = vmax.f32 %v981, 0.0
      %v1020 = vmax.f32 %v984, 0.0
      %v1021 = vmax.f32 %v989, 0.0
      %v1022 = vmax.f32 %v992, 0.0
      %v1023 = vmax.f32 %v997, 0.0
      %v1024 = vmax.f32 %v1000, 0.0
      %v1025 = vmax.f32 %v1005, 0.0
      %v1026 = vmax.f32 %v1008, 0.0
      %1027 = vst.msk [vmem:[#allocation2] sm:$0xff] %vm846, %v1011
      %1028 = vst.msk [vmem:[#allocation2 + $0x8] sm:$0xff] %vm846, %v1012
      %1029 = vst.msk [vmem:[#allocation2 + $0x10] sm:$0xff] %vm846, %v1013
      %1030 = vst.msk [vmem:[#allocation2 + $0x18] sm:$0xff] %vm846, %v1014
      %1031 = vst.msk [vmem:[#allocation2 + $0x20] sm:$0xff] %vm846, %v1015
      %1032 = vst.msk [vmem:[#allocation2 + $0x28] sm:$0xff] %vm846, %v1016
      %1033 = vst.msk [vmem:[#allocation2 + $0x30] sm:$0xff] %vm846, %v1017
      %1034 = vst.msk [vmem:[#allocation2 + $0x38] sm:$0xff] %vm846, %v1018
      %1035 = vst.msk [vmem:[#allocation2 + $0x40] sm:$0xff] %vm846, %v1019
      %1036 = vst.msk [vmem:[#allocation2 + $0x48] sm:$0xff] %vm846, %v1020
      %1037 = vst.msk [vmem:[#allocation2 + $0x50] sm:$0xff] %vm846, %v1021
      %1038 = vst.msk [vmem:[#allocation2 + $0x58] sm:$0xff] %vm846, %v1022
      %1039 = vst.msk [vmem:[#allocation2 + $0x60] sm:$0xff] %vm846, %v1023
      %1040 = vst.msk [vmem:[#allocation2 + $0x68] sm:$0xff] %vm846, %v1024
      %1041 = vst.msk [vmem:[#allocation2 + $0x70] sm:$0xff] %vm846, %v1025
      %1042 = vst.msk [vmem:[#allocation2 + $0x78] sm:$0xff] %vm846, %v1026
      %v1043 = vld [vmem:[#allocation2] ss:$2 sm:$0xff]
      %s1044 = scalar_lea.vmem [#allocation2], 16
      %v1045 = vld [vmem:[%s1044] ss:$2 sm:$0xff]
      %s1046 = scalar_lea.vmem [#allocation2], 32
      %v1047 = vld [vmem:[%s1046] ss:$2 sm:$0xff]
      %s1048 = scalar_lea.vmem [#allocation2], 48
      %v1049 = vld [vmem:[%s1048] ss:$2 sm:$0xff]
      %s1050 = scalar_lea.vmem [#allocation2], 64
      %v1051 = vld [vmem:[%s1050] ss:$2 sm:$0xff]
      %s1052 = scalar_lea.vmem [#allocation2], 80
      %v1053 = vld [vmem:[%s1052] ss:$2 sm:$0xff]
      %s1054 = scalar_lea.vmem [#allocation2], 96
      %v1055 = vld [vmem:[%s1054] ss:$2 sm:$0xff]
      %s1056 = scalar_lea.vmem [#allocation2], 112
      %v1057 = vld [vmem:[%s1056] ss:$2 sm:$0xff]
      %s1058 = scalar_lea.vmem [#allocation2], 1
      %v1059 = vld [vmem:[%s1058] ss:$2 sm:$0xff]
      %s1060 = scalar_lea.vmem [#allocation2], 17
      %v1061 = vld [vmem:[%s1060] ss:$2 sm:$0xff]
      %s1062 = scalar_lea.vmem [#allocation2], 33
      %v1063 = vld [vmem:[%s1062] ss:$2 sm:$0xff]
      %s1064 = scalar_lea.vmem [#allocation2], 49
      %v1065 = vld [vmem:[%s1064] ss:$2 sm:$0xff]
      %s1066 = scalar_lea.vmem [#allocation2], 65
      %v1067 = vld [vmem:[%s1066] ss:$2 sm:$0xff]
      %s1068 = scalar_lea.vmem [#allocation2], 81
      %v1069 = vld [vmem:[%s1068] ss:$2 sm:$0xff]
      %s1070 = scalar_lea.vmem [#allocation2], 97
      %v1071 = vld [vmem:[%s1070] ss:$2 sm:$0xff]
      %s1072 = scalar_lea.vmem [#allocation2], 113
      %v1073 = vld [vmem:[%s1072] ss:$2 sm:$0xff]
      %v1074 = vmax.f32 %v1043, %v1059
      %v1075 = vmax.f32 %v1045, %v1061
      %v1076 = vmax.f32 %v1047, %v1063
      %v1077 = vmax.f32 %v1049, %v1065
      %v1078 = vmax.f32 %v1051, %v1067
      %v1079 = vmax.f32 %v1053, %v1069
      %v1080 = vmax.f32 %v1055, %v1071
      %v1081 = vmax.f32 %v1057, %v1073
      %vm1082 = vcmp.lt.s32.totalorder %v299, 0
      %v1083 = vsub.s32 0, %v299
      %v1084 = vsel %vm1082, %v1083, %v299
      %v1085 = vshrl.u32 %v1084, 3
      %v1086 = vand.u32 %v1084, 7
      %v1087 = vsub.s32 0, %v1086
      %v1088 = vsel %vm1082, %v1087, %v1086
      %vm1089 = vcmp.lt.s32.totalorder %v300, 0
      %v1090 = vsub.s32 0, %v300
      %v1091 = vsel %vm1089, %v1090, %v300
      %v1092 = vshrl.u32 %v1091, 3
      %v1093 = vand.u32 %v1091, 7
      %v1094 = vsub.s32 0, %v1093
      %v1095 = vsel %vm1089, %v1094, %v1093
      %vm1096 = vcmp.lt.s32.totalorder %v301, 0
      %v1097 = vsub.s32 0, %v301
      %v1098 = vsel %vm1096, %v1097, %v301
      %v1099 = vshrl.u32 %v1098, 3
      %v1100 = vand.u32 %v1098, 7
      %v1101 = vsub.s32 0, %v1100
      %v1102 = vsel %vm1096, %v1101, %v1100
      %vm1103 = vcmp.lt.s32.totalorder %v302, 0
      %v1104 = vsub.s32 0, %v302
      %v1105 = vsel %vm1103, %v1104, %v302
      %v1106 = vshrl.u32 %v1105, 3
      %v1107 = vand.u32 %v1105, 7
      %v1108 = vsub.s32 0, %v1107
      %v1109 = vsel %vm1103, %v1108, %v1107
      %vm1110 = vcmp.lt.s32.totalorder %v303, 0
      %v1111 = vsub.s32 0, %v303
      %v1112 = vsel %vm1110, %v1111, %v303
      %v1113 = vshrl.u32 %v1112, 3
      %v1114 = vand.u32 %v1112, 7
      %v1115 = vsub.s32 0, %v1114
      %v1116 = vsel %vm1110, %v1115, %v1114
      %vm1117 = vcmp.lt.s32.totalorder %v304, 0
      %v1118 = vsub.s32 0, %v304
      %v1119 = vsel %vm1117, %v1118, %v304
      %v1120 = vshrl.u32 %v1119, 3
      %v1121 = vand.u32 %v1119, 7
      %v1122 = vsub.s32 0, %v1121
      %v1123 = vsel %vm1117, %v1122, %v1121
      %vm1124 = vcmp.lt.s32.totalorder %v305, 0
      %v1125 = vsub.s32 0, %v305
      %v1126 = vsel %vm1124, %v1125, %v305
      %v1127 = vshrl.u32 %v1126, 3
      %v1128 = vand.u32 %v1126, 7
      %v1129 = vsub.s32 0, %v1128
      %v1130 = vsel %vm1124, %v1129, %v1128
      %vm1131 = vcmp.lt.s32.totalorder %v306, 0
      %v1132 = vsub.s32 0, %v306
      %v1133 = vsel %vm1131, %v1132, %v306
      %v1134 = vshrl.u32 %v1133, 3
      %v1135 = vand.u32 %v1133, 7
      %v1136 = vsub.s32 0, %v1135
      %v1137 = vsel %vm1131, %v1136, %v1135
      %vm1138 = vcmp.ne.s32.totalorder %v1088, 0
      %vm1139 = vcmp.ne.s32.totalorder %v1095, 0
      %vm1140 = vcmp.ne.s32.totalorder %v1102, 0
      %vm1141 = vcmp.ne.s32.totalorder %v1109, 0
      %vm1142 = vcmp.ne.s32.totalorder %v1116, 0
      %vm1143 = vcmp.ne.s32.totalorder %v1123, 0
      %vm1144 = vcmp.ne.s32.totalorder %v1130, 0
      %vm1145 = vcmp.ne.s32.totalorder %v1137, 0
      %vm1146 = vcmp.lt.s32.totalorder %v1088, 0
      %vm1147 = vcmp.lt.s32.totalorder %v1095, 0
      %vm1148 = vcmp.lt.s32.totalorder %v1102, 0
      %vm1149 = vcmp.lt.s32.totalorder %v1109, 0
      %vm1150 = vcmp.lt.s32.totalorder %v1116, 0
      %vm1151 = vcmp.lt.s32.totalorder %v1123, 0
      %vm1152 = vcmp.lt.s32.totalorder %v1130, 0
      %vm1153 = vcmp.lt.s32.totalorder %v1137, 0
      %vm1154 = vmand %vm1146, %vm1138
      %vm1155 = vmand %vm1147, %vm1139
      %vm1156 = vmand %vm1148, %vm1140
      %vm1157 = vmand %vm1149, %vm1141
      %vm1158 = vmand %vm1150, %vm1142
      %vm1159 = vmand %vm1151, %vm1143
      %vm1160 = vmand %vm1152, %vm1144
      %vm1161 = vmand %vm1153, %vm1145
      %v1162 = vadd.s32 %v1088, 8
      %v1163 = vadd.s32 %v1095, 8
      %v1164 = vadd.s32 %v1102, 8
      %v1165 = vadd.s32 %v1109, 8
      %v1166 = vadd.s32 %v1116, 8
      %v1167 = vadd.s32 %v1123, 8
      %v1168 = vadd.s32 %v1130, 8
      %v1169 = vadd.s32 %v1137, 8
      %v1170 = vsel %vm1154, %v1162, %v1088
      %v1171 = vsel %vm1155, %v1163, %v1095
      %v1172 = vsel %vm1156, %v1164, %v1102
      %v1173 = vsel %vm1157, %v1165, %v1109
      %v1174 = vsel %vm1158, %v1166, %v1116
      %v1175 = vsel %vm1159, %v1167, %v1123
      %v1176 = vsel %vm1160, %v1168, %v1130
      %v1177 = vsel %vm1161, %v1169, %v1137
      %v1178 = vrot.slane %v1074, 6
      %v1179 = vrot.slane %v1075, 6
      %v1180 = vrot.slane %v1076, 6
      %v1181 = vrot.slane %v1077, 6
      %v1182 = vrot.slane %v1078, 6
      %v1183 = vrot.slane %v1079, 6
      %v1184 = vrot.slane %v1080, 6
      %v1185 = vrot.slane %v1081, 6
      %vm1186 = vcmp.lt.s32.totalorder %v299, 2
      %v1187 = vsel %vm1186, %v1184, %v1185
      %v1188 = vsel %vm1186, %v1183, %v1184
      %v1189 = vsel %vm1186, %v1182, %v1183
      %v1190 = vsel %vm1186, %v1181, %v1182
      %v1191 = vsel %vm1186, %v1180, %v1181
      %v1192 = vsel %vm1186, %v1179, %v1180
      %v1193 = vsel %vm1186, %v1178, %v1179
      %v1194 = vsel %vm1186, %v1185, %v1178
      %vm1195 = vcmp.ge.s32.totalorder %v1170, 2
      %vm1196 = vcmp.ge.s32.totalorder %v1171, 2
      %vm1197 = vcmp.ge.s32.totalorder %v1172, 2
      %vm1198 = vcmp.ge.s32.totalorder %v1173, 2
      %vm1199 = vcmp.ge.s32.totalorder %v1174, 2
      %vm1200 = vcmp.ge.s32.totalorder %v1175, 2
      %vm1201 = vcmp.ge.s32.totalorder %v1176, 2
      %vm1202 = vcmp.ge.s32.totalorder %v1177, 2
      %v1203 = vsel %vm1195, 1, 0
      %v1204 = vsel %vm1196, 1, 0
      %v1205 = vsel %vm1197, 1, 0
      %v1206 = vsel %vm1198, 1, 0
      %v1207 = vsel %vm1199, 1, 0
      %v1208 = vsel %vm1200, 1, 0
      %v1209 = vsel %vm1201, 1, 0
      %v1210 = vsel %vm1202, 1, 0
      %vm1211 = vcmp.eq.s32.totalorder %v1203, 1
      %vm1212 = vcmp.eq.s32.totalorder %v1204, 1
      %vm1213 = vcmp.eq.s32.totalorder %v1205, 1
      %vm1214 = vcmp.eq.s32.totalorder %v1206, 1
      %vm1215 = vcmp.eq.s32.totalorder %v1207, 1
      %vm1216 = vcmp.eq.s32.totalorder %v1208, 1
      %vm1217 = vcmp.eq.s32.totalorder %v1209, 1
      %vm1218 = vcmp.eq.s32.totalorder %v1210, 1
      %v1219 = vsel %vm1211, %v1194, 0.0
      %v1220 = vsel %vm1212, %v1193, 0.0
      %v1221 = vsel %vm1213, %v1192, 0.0
      %v1222 = vsel %vm1214, %v1191, 0.0
      %v1223 = vsel %vm1215, %v1190, 0.0
      %v1224 = vsel %vm1216, %v1189, 0.0
      %v1225 = vsel %vm1217, %v1188, 0.0
      %v1226 = vsel %vm1218, %v1187, 0.0
      %v1227 = vrot.slane %v1074, 2
      %v1228 = vrot.slane %v1075, 2
      %v1229 = vrot.slane %v1076, 2
      %v1230 = vrot.slane %v1077, 2
      %v1231 = vrot.slane %v1078, 2
      %v1232 = vrot.slane %v1079, 2
      %v1233 = vrot.slane %v1080, 2
      %v1234 = vrot.slane %v1081, 2
      %vm1235 = vcmp.lt.s32.totalorder %v299, 6
      %v1236 = vsel %vm1235, %v1233, %v1234
      %v1237 = vsel %vm1235, %v1232, %v1233
      %v1238 = vsel %vm1235, %v1231, %v1232
      %v1239 = vsel %vm1235, %v1230, %v1231
      %v1240 = vsel %vm1235, %v1229, %v1230
      %v1241 = vsel %vm1235, %v1228, %v1229
      %v1242 = vsel %vm1235, %v1227, %v1228
      %v1243 = vsel %vm1235, %v1234, %v1227
      %vm1244 = vcmp.lt.s32.totalorder %v1170, 6
      %vm1245 = vcmp.lt.s32.totalorder %v1171, 6
      %vm1246 = vcmp.lt.s32.totalorder %v1172, 6
      %vm1247 = vcmp.lt.s32.totalorder %v1173, 6
      %vm1248 = vcmp.lt.s32.totalorder %v1174, 6
      %vm1249 = vcmp.lt.s32.totalorder %v1175, 6
      %vm1250 = vcmp.lt.s32.totalorder %v1176, 6
      %vm1251 = vcmp.lt.s32.totalorder %v1177, 6
      %v1252 = vsel %vm1244, 1, 0
      %v1253 = vsel %vm1245, 1, 0
      %v1254 = vsel %vm1246, 1, 0
      %v1255 = vsel %vm1247, 1, 0
      %v1256 = vsel %vm1248, 1, 0
      %v1257 = vsel %vm1249, 1, 0
      %v1258 = vsel %vm1250, 1, 0
      %v1259 = vsel %vm1251, 1, 0
      %vm1260 = vcmp.eq.s32.totalorder %v1252, 1
      %vm1261 = vcmp.eq.s32.totalorder %v1253, 1
      %vm1262 = vcmp.eq.s32.totalorder %v1254, 1
      %vm1263 = vcmp.eq.s32.totalorder %v1255, 1
      %vm1264 = vcmp.eq.s32.totalorder %v1256, 1
      %vm1265 = vcmp.eq.s32.totalorder %v1257, 1
      %vm1266 = vcmp.eq.s32.totalorder %v1258, 1
      %vm1267 = vcmp.eq.s32.totalorder %v1259, 1
      %v1268 = vsel %vm1260, %v1242, 0.0
      %v1269 = vsel %vm1261, %v1241, 0.0
      %v1270 = vsel %vm1262, %v1240, 0.0
      %v1271 = vsel %vm1263, %v1239, 0.0
      %v1272 = vsel %vm1264, %v1238, 0.0
      %v1273 = vsel %vm1265, %v1237, 0.0
      %v1274 = vsel %vm1266, %v1236, 0.0
      %v1275 = vsel %vm1267, %v1243, 0.0
      %1284 = vrot.lane.b32.xlu0 %v1074, 8
      %v1285 = vpop.permute.xlu0 %1284
      %1286 = vrot.lane.b32.xlu0 %v1075, 8
      %v1287 = vpop.permute.xlu0 %1286
      %1288 = vrot.lane.b32.xlu0 %v1076, 8
      %v1289 = vpop.permute.xlu0 %1288
      %1290 = vrot.lane.b32.xlu0 %v1077, 8
      %v1291 = vpop.permute.xlu0 %1290
      %1292 = vrot.lane.b32.xlu0 %v1078, 8
      %v1293 = vpop.permute.xlu0 %1292
      %1294 = vrot.lane.b32.xlu0 %v1079, 8
      %v1295 = vpop.permute.xlu0 %1294
      %1296 = vrot.lane.b32.xlu0 %v1080, 8
      %v1297 = vpop.permute.xlu0 %1296
      %1298 = vrot.lane.b32.xlu0 %v1081, 8
      %v1299 = vpop.permute.xlu0 %1298
      %1316 = vrot.lane.b32.xlu0 %v1268, 16
      %v1317 = vpop.permute.xlu0 %1316
      %1318 = vrot.lane.b32.xlu0 %v1269, 16
      %v1319 = vpop.permute.xlu0 %1318
      %1320 = vrot.lane.b32.xlu0 %v1270, 16
      %v1321 = vpop.permute.xlu0 %1320
      %1322 = vrot.lane.b32.xlu0 %v1271, 16
      %v1323 = vpop.permute.xlu0 %1322
      %1324 = vrot.lane.b32.xlu0 %v1272, 16
      %v1325 = vpop.permute.xlu0 %1324
      %1326 = vrot.lane.b32.xlu0 %v1273, 16
      %v1327 = vpop.permute.xlu0 %1326
      %1328 = vrot.lane.b32.xlu0 %v1274, 16
      %v1329 = vpop.permute.xlu0 %1328
      %1330 = vrot.lane.b32.xlu0 %v1275, 16
      %v1331 = vpop.permute.xlu0 %1330
      %v1340 = vsel %vm846, %v1219, %v1285
      %v1341 = vsel %vm846, %v1220, %v1287
      %v1342 = vsel %vm846, %v1221, %v1289
      %v1343 = vsel %vm846, %v1222, %v1291
      %v1344 = vsel %vm846, %v1223, %v1293
      %v1345 = vsel %vm846, %v1224, %v1295
      %v1346 = vsel %vm846, %v1225, %v1297
      %v1347 = vsel %vm846, %v1226, %v1299
      %vm1348 = vcmask 130048
      %v1349 = vsel %vm1348, %v1340, %v1317
      %v1350 = vsel %vm1348, %v1341, %v1319
      %v1351 = vsel %vm1348, %v1342, %v1321
      %v1352 = vsel %vm1348, %v1343, %v1323
      %v1353 = vsel %vm1348, %v1344, %v1325
      %v1354 = vsel %vm1348, %v1345, %v1327
      %v1355 = vsel %vm1348, %v1346, %v1329
      %v1356 = vsel %vm1348, %v1347, %v1331
      %v1357 = vpack.c.bf16 %v1350, %v1349
      %v1358 = vpack.c.bf16 %v1352, %v1351
      %v1359 = vpack.c.bf16 %v1354, %v1353
      %v1360 = vpack.c.bf16 %v1356, %v1355
      %v1361 = vld [vmem:[%s3] sm:$0xf]
      %v1362 = vld [vmem:[%s3 + $0x4] sm:$0xf]
      %v1363 = vld [vmem:[%s3 + $0x8] sm:$0xf]
      %v1364 = vld [vmem:[%s4] sm:$0x1]
      %v1366 = vlaneseq
      %v1367 = vshrl.u32 %v1366, 7
      %v1368 = vsub.s32 0, %v1367
      %v1369 = vrot.slane %v1364, %v1368
      %v1374 = vunpack.c.l.b16 %v1361
      %v1375 = vunpack.c.l.b16 %v1362
      %v1376 = vunpack.c.l.b16 %v1363
      %v1377 = vpack.c.b16 %v1375, %v1374
      %v1378 = vpack.c.b16 %v1376, %v1376
      %vm1380 = vcmask 195584
      %v1382 = vsel %vm1380, %v1357, 0
      %v1385 = vsel %vm1380, %v1358, 0
      %v1388 = vsel %vm1380, %v1359, 0
      %v1391 = vsel %vm1380, %v1360, 0
      %vm1393 = vcmask 1043456
      %v1395 = vsel %vm1393, %v1378, 0
      %1397 = vmatprep.subr.bf16.mxu0 0
      %1398 = vmatpush1.bf16.msra.mxu0 0
      %1399 = vmatprep.subr.bf16.mxu0 0
      %1400 = vmatpush1.bf16.msra.mxu0 0
      %1401 = vmatprep.subr.bf16.mxu0 0
      %1402 = vmatpush1.bf16.msra.mxu0 0
      %1403 = vmatprep.subr.bf16.mxu0 0
      %1404 = vmatpush1.bf16.msra.mxu0 0
      %1405 = vmatprep.subr.bf16.mxu0 0
      %1406 = vmatpush1.bf16.msra.mxu0 0
      %1407 = vmatprep.subr.bf16.mxu0 0
      %1408 = vmatpush1.bf16.msra.mxu0 0
      %1409 = vmatprep.subr.bf16.mxu0 0
      %1410 = vmatpush1.bf16.msra.mxu0 %v1395
      %1411 = vmatprep.subr.bf16.mxu0 0
      %1412 = vmatpush1.bf16.msra.mxu0 %v1377
      %1413 = vmatprep.subr.bf16.mxu0 0
      %1414 = vmatpush2.bf16.msra.mxu0 0
      %1415 = vmatprep.subr.bf16.mxu0 0
      %1416 = vmatpush2.bf16.msra.mxu0 0
      %1417 = vmatprep.subr.bf16.mxu0 0
      %1418 = vmatpush2.bf16.msra.mxu0 0
      %1419 = vmatprep.subr.bf16.mxu0 0
      %1420 = vmatpush2.bf16.msra.mxu0 0
      %1421 = vmatprep.subr.bf16.mxu0 0
      %1422 = vmatpush2.bf16.msra.mxu0 0
      %1423 = vmatprep.subr.bf16.mxu0 0
      %1424 = vmatpush2.bf16.msra.mxu0 0
      %1425 = vmatprep.subr.bf16.mxu0 0
      %1426 = vmatpush2.bf16.msra.mxu0 0
      %1427 = vmatprep.subr.bf16.mxu0 0
      %1428 = vmatpush2.bf16.msra.mxu0 0
      %1429 = vmatprep.mubr.bf16.mxu0 0
      %1430 = vmatmul.mubr.bf16.gmra.mxu0 %v1382
      %v1431 = vpop.f32.mrf.mxu0
      %v1432 = vadd.f32 %v1369, %v1431
      %v1433 = vpop.f32.mrf.mxu0
      %v1434 = vpop.f32.mrf.mxu0
      %v1435 = vadd.f32 %v1369, %v1434
      %v1436 = vpop.f32.mrf.mxu0
      %1437 = vmatprep.mubr.bf16.mxu0 0
      %1438 = vmatmul.mubr.bf16.gmra.mxu0 %v1385
      %v1439 = vpop.f32.mrf.mxu0
      %v1440 = vadd.f32 %v1369, %v1439
      %v1441 = vpop.f32.mrf.mxu0
      %v1442 = vpop.f32.mrf.mxu0
      %v1443 = vadd.f32 %v1369, %v1442
      %v1444 = vpop.f32.mrf.mxu0
      %1445 = vmatprep.mubr.bf16.mxu0 0
      %1446 = vmatmul.mubr.bf16.gmra.mxu0 %v1388
      %v1447 = vpop.f32.mrf.mxu0
      %v1448 = vadd.f32 %v1369, %v1447
      %v1449 = vpop.f32.mrf.mxu0
      %v1450 = vpop.f32.mrf.mxu0
      %v1451 = vadd.f32 %v1369, %v1450
      %v1452 = vpop.f32.mrf.mxu0
      %1453 = vmatprep.mubr.bf16.mxu0 0
      %1454 = vmatmul.mubr.bf16.gmra.mxu0 %v1391
      %v1455 = vpop.f32.mrf.mxu0
      %v1456 = vadd.f32 %v1369, %v1455
      %v1457 = vpop.f32.mrf.mxu0
      %v1458 = vpop.f32.mrf.mxu0
      %v1459 = vadd.f32 %v1369, %v1458
      %v1460 = vpop.f32.mrf.mxu0
      %1461 = vdwg.mxu0
      %v1462 = vtanh.pop %v1432
      %v1463 = vtanh.pop %v1435
      %v1464 = vtanh.pop %v1440
      %v1465 = vtanh.pop %v1443
      %v1466 = vtanh.pop %v1448
      %v1467 = vtanh.pop %v1451
      %v1468 = vtanh.pop %v1456
      %v1469 = vtanh.pop %v1459
      %1470 = vst.msk [vmem:[#allocation2] sm:$0xff] %vm1348, %v1462
      %1471 = vst.msk [vmem:[#allocation2 + $0x8] sm:$0xff] %vm1348, %v1463
      %1472 = vst.msk [vmem:[#allocation2 + $0x10] sm:$0xff] %vm1348, %v1464
      %1473 = vst.msk [vmem:[#allocation2 + $0x18] sm:$0xff] %vm1348, %v1465
      %1474 = vst.msk [vmem:[#allocation2 + $0x20] sm:$0xff] %vm1348, %v1466
      %1475 = vst.msk [vmem:[#allocation2 + $0x28] sm:$0xff] %vm1348, %v1467
      %1476 = vst.msk [vmem:[#allocation2 + $0x30] sm:$0xff] %vm1348, %v1468
      %1477 = vst.msk [vmem:[#allocation2 + $0x38] sm:$0xff] %vm1348, %v1469
      %v1478 = vld [vmem:[#allocation2] ss:$2 sm:$0xff]
      %v1479 = vld [vmem:[%s1044] ss:$2 sm:$0xff]
      %v1480 = vld [vmem:[%s1046] ss:$2 sm:$0xff]
      %v1481 = vld [vmem:[%s1048] ss:$2 sm:$0xff]
      %v1482 = vld [vmem:[%s1058] ss:$2 sm:$0xff]
      %v1483 = vld [vmem:[%s1060] ss:$2 sm:$0xff]
      %v1484 = vld [vmem:[%s1062] ss:$2 sm:$0xff]
      %v1485 = vld [vmem:[%s1064] ss:$2 sm:$0xff]
      %v1486 = vmax.f32 %v1478, %v1482
      %v1487 = vmax.f32 %v1479, %v1483
      %v1488 = vmax.f32 %v1480, %v1484
      %v1489 = vmax.f32 %v1481, %v1485
      %v1490 = vld [vmem:[%s5] sm:$0xff]
      %v1491 = vld [vmem:[%s5 + $0x8] sm:$0xff]
      %v1492 = vld [vmem:[%s5 + $0x10] sm:$0xff]
      %v1493 = vld [vmem:[%s5 + $0x18] sm:$0xff]
      %v1494 = vmul.f32 %v1486, %v1490
      %v1495 = vmul.f32 %v1487, %v1491
      %v1496 = vmul.f32 %v1488, %v1492
      %v1497 = vmul.f32 %v1489, %v1493
      %1498 = vst.msk [vmem:[#allocation2] sm:$0xff] %vm1348, %v1494
      %1499 = vst.msk [vmem:[#allocation2 + $0x8] sm:$0xff] %vm1348, %v1495
      %1500 = vst.msk [vmem:[#allocation2 + $0x10] sm:$0xff] %vm1348, %v1496
      %1501 = vst.msk [vmem:[#allocation2 + $0x18] sm:$0xff] %vm1348, %v1497
      %v1502 = vld [vmem:[#allocation2] ss:$4 sm:$0xff]
      %v1503 = vadd.f32 %v1502, 0.0
      %v1504 = vld [vmem:[%s1058] ss:$4 sm:$0xff]
      %v1505 = vadd.f32 %v1503, %v1504
      %s1506 = scalar_lea.vmem [#allocation2], 2
      %v1507 = vld [vmem:[%s1506] ss:$4 sm:$0xff]
      %v1508 = vadd.f32 %v1505, %v1507
      %s1509 = scalar_lea.vmem [#allocation2], 3
      %v1510 = vld [vmem:[%s1509] ss:$4 sm:$0xff]
      %v1511 = vadd.f32 %v1508, %v1510
      %v1512 = vsel %vm1348, %v1511, 0.0
      %1513 = vadd.xlane.f32.xlu0 %v1512
      %v1514 = vpop.xlane.xlu0 %1513
      %v1515 = vld [vmem:[#allocation3] sm:$0x1]
      %v1517 = vlaneseq
      %v1518 = vshrl.u32 %v1517, 7
      %v1519 = vsub.s32 0, %v1518
      %v1520 = vrot.slane %v1515, %v1519
      %v1522 = vadd.f32 %v1514, %v1520
      %v1523 = vxor.u32 %v1522, 2147483648
      %v1524 = vmul.f32 %v1523, 1.442695
      %v1525 = vpow.pop %v1524
      %v1526 = vadd.f32 %v1525, 1.0
      %v1527 = vrcp.pop %v1526
      %v1528 = vmul.f32 1.0, %v1527
      %vm1529 = vcmask 7168
      %1530 = vst.msk [vmem:[%s280] sm:$0xff] %vm1529, %v1528
      %p1531 = scmp.lt.s32.totalorder %s20, 1
      %s1532 = scalar_select %p1531, %s20, 1
      %s1533 = smul.addr %s1532, 8
      %s1534 = scalar_lea.vmem %s7, %s1533
      // Predicated region
      $region49: #{_lambda_.1} parent=47 // pred_check
        %p1535 = pneg %p190
      $region50: #{_lambda_.1} parent=47 // pred_check_branch
        %1537 = sbr.rel (%p1535) target = $region52
      $region51: #{_lambda_.1} parent=47 // pred_region
        _
      $region52: #{_lambda_.1} parent=47 // pred_fallthru
        _
    $region48: #{_lambda_.1} parent=5 // pred_fallthru
      _
    %p1538 = scmp.le.s32.totalorder 2, %s15
    // Predicated region
    $region53: #{_lambda_.1} parent=5 // pred_check
      %p1539 = pneg %p1538
    $region54: #{_lambda_.1} parent=5 // pred_check_branch
      %1541 = sbr.rel (%p1539) target = $region56
    $region55: #{_lambda_.1} parent=5 // pred_region
      %s1542 = ssub.s32 %s15, 2
      // Predicated region
      $region57: #{_lambda_.1} parent=55 // pred_check
        %p1543 = pneg %p196
      $region58: #{_lambda_.1} parent=55 // pred_check_branch
        %1545 = sbr.rel (%p1543) target = $region60
      $region59: #{_lambda_.1} parent=55 // pred_region
        %p1546 = scmp.lt.s32.totalorder %s21, 1
        %s1547 = scalar_select %p1546, %s21, 1
        %s1548 = smul.addr %s1547, 8
        %s1549 = scalar_lea.vmem %s7, %s1548
      $region60: #{_lambda_.1} parent=55 // pred_fallthru
        _
    $region56: #{_lambda_.1} parent=5 // pred_fallthru
      _
  $region6: #{_lambda_.1} parent=0 // loop_footer
    %s19 = sadd.s32 1, %s15
  $region7: #{_lambda_.1} parent=0 // loop_footer_branch
    %14 = sbr.rel target = $region3
  $region8: #{_lambda_.1} parent=0 // loop_exit
    _

</llo_original>
